<compile_context>
chip_gen: v7x
topology: tpu7x:2x2x1
jax: 0.10.0
libtpu: 0.0.40
codegen_flags: <defaults>
</compile_context>

<pallas_src>
import functools

import jax
import jax.numpy as jnp
from jax.experimental import pallas as pl
from jax.experimental.pallas import tpu as pltpu


_MIN_PALLAS_M = 512  # below this, a fused XLA matmul beats kernel launch cost


def _round_up(x: int, m: int) -> int:
    return ((x + m - 1) // m) * m


def _select_tiles(M: int, N_p: int):
    """Pick MXU/HBM-friendly tile sizes.  N_p is already a multiple of 128."""
    tm = min(2048, _round_up(M, 512))                  # large M tiles: HBM-bound
    tn = 256 if N_p % 256 == 0 else 128                # N_p % 128 == 0 by padding
    return tm, tn


# ----------------------------------------------------------------------------
# Pallas kernel: one (tm, K) x (K, tn) matmul per grid step (K fully resident).
# ----------------------------------------------------------------------------
def _patch_embed_matmul_kernel(x_ref, w_ref, o_ref):
    o_ref[...] = jnp.dot(
        x_ref[...], w_ref[...], preferred_element_type=jnp.float32
    ).astype(o_ref.dtype)


def patch_embed_matmul(patches, weight, *, tm, tn):
    """patches: [M_p, K_p] bf16, weight: [K_p, N_p] bf16 -> [M_p, N_p] bf16.

    M_p % tm == 0, N_p % tn == 0, K_p % 128 == 0 (caller pads).
    """
    M_p, K_p = patches.shape
    K_p2, N_p = weight.shape
    assert K_p == K_p2
    m_blocks = M_p // tm
    n_blocks = N_p // tn

    cost = pl.CostEstimate(
        flops=2 * M_p * K_p * N_p,
        transcendentals=0,
        bytes_accessed=(
            M_p * K_p * patches.dtype.itemsize
            + K_p * N_p * weight.dtype.itemsize
            + M_p * N_p * 2                      # bf16 output writeback
        ),
    )

    if n_blocks == 1:
        # embed_dim fits one block: 1-D parallel grid over M (v7x megacore
        # shards the M axis cleanly across both TensorCores).
        grid = (m_blocks,)
        in_specs = [
            pl.BlockSpec((tm, K_p), lambda i: (i, 0)),
            pl.BlockSpec((K_p, N_p), lambda i: (0, 0)),
        ]
        out_specs = pl.BlockSpec((tm, N_p), lambda i: (i, 0))
        dim_sem = ("parallel",)
    else:
        grid = (m_blocks, n_blocks)
        in_specs = [
            pl.BlockSpec((tm, K_p), lambda i, j: (i, 0)),
            pl.BlockSpec((K_p, tn), lambda i, j: (0, j)),
        ]
        out_specs = pl.BlockSpec((tm, tn), lambda i, j: (i, j))
        dim_sem = ("parallel", "parallel")

    return pl.pallas_call(
        _patch_embed_matmul_kernel,
        out_shape=jax.ShapeDtypeStruct((M_p, N_p), jnp.bfloat16),
        grid_spec=pltpu.PrefetchScalarGridSpec(
            num_scalar_prefetch=0,
            grid=grid,
            in_specs=in_specs,
            out_specs=out_specs,
        ),
        compiler_params=pltpu.CompilerParams(
            dimension_semantics=dim_sem,
            vmem_limit_bytes=48 * 1024 * 1024,
            # Let XLA fuse the patchify/pad/cast producer into the kernel's
            # input DMA so the MxK patch matrix never round-trips HBM.
            allow_input_fusion=[True, False],
        ),
        cost_estimate=cost,
    )(patches, weight)


# ----------------------------------------------------------------------------
# Patchify (NCHW -> [M, K]) + bf16 cast + pad + Pallas matmul, all in one jit.
# ----------------------------------------------------------------------------
@functools.partial(jax.jit, static_argnames=("patch_size", "embed_dim"))
def patch_embed_forward(images, weight_bf16, *, patch_size, embed_dim):
    B, C, H, W = images.shape
    P = patch_size
    Hg, Wg = H // P, W // P

    # Cast straight to bf16 (no f32 intermediate), then patchify.  Per-patch
    # flatten order matches the Conv3d weight flatten order (C, T=1, pH, pW).
    x = images.astype(jnp.bfloat16).reshape(B, C, Hg, P, Wg, P)
    x = jnp.transpose(x, (0, 2, 4, 1, 3, 5))            # B, Hg, Wg, C, P, P
    patches = x.reshape(B * Hg * Wg, C * P * P)

    M, K = patches.shape
    K_p, N_p = weight_bf16.shape

    if M < _MIN_PALLAS_M:
        # Tiny-M path: a single XLA-fused matmul; the pallas launch is pure
        # overhead for a 1-2 step grid.
        out = jnp.dot(
            patches, weight_bf16[:K, :], preferred_element_type=jnp.float32
        ).astype(jnp.bfloat16)
        return out[:, :embed_dim]

    if K_p > K:  # zero-pad K to match the padded weight (zeros contribute 0)
        patches = jnp.pad(patches, ((0, 0), (0, K_p - K)))

    tm, tn = _select_tiles(M, N_p)
    M_p = _round_up(M, tm)
    if M_p > M:
        patches = jnp.pad(patches, ((0, M_p - M), (0, 0)))

    out = patch_embed_matmul(patches, weight_bf16, tm=tm, tn=tn)
    return out[:M, :embed_dim]


# ----------------------------------------------------------------------------
# JAX re-implementation of the QwenSamBackbone forward compute path.
# ----------------------------------------------------------------------------
class QwenSamBackbonePallas:
    """Pallas/JAX stand-in for QwenSamBackbone.

    Only the deterministic, compute-relevant pieces of forward() are
    reproduced:
      - image_grid_thw computation (_calculate_grid_thw)
      - the overridden PatchEmbed: Conv3d(in_channels, embed_dim,
        kernel=(T, P, P), stride=(T, P, P), bias=False) applied to the
        patchified pixel values, exactly as Qwen2-VL's vision tower would.
    """

    def __init__(
        self,
        in_channels: int = 3,
        embed_dim: int = 128,
        override_patch_size: int = 16,
        override_temporal_patch_size: int = 1,
        seed: int = 0,
    ):
        assert override_temporal_patch_size == 1, (
            "single-frame path only (temporal_patch_size must be 1)"
        )  # TODO(synk): temporal_patch_size > 1 (frame replication) not implemented
        self.in_channels = in_channels
        self.embed_dim = embed_dim
        self.override_patch_size = override_patch_size
        self.override_temporal_patch_size = override_temporal_patch_size

        # Deterministic Conv3d weight:
        # PyTorch shape [embed_dim, in_channels, T, P, P], no bias.
        key = jax.random.PRNGKey(seed)
        P = override_patch_size
        T = override_temporal_patch_size
        w = jax.random.normal(
            key, (embed_dim, in_channels, T, P, P), dtype=jnp.float32
        ) * 0.02
        # Flatten to matmul form: [K, N] with K = C*T*P*P, N = embed_dim.
        w_f32 = w.reshape(embed_dim, in_channels * T * P * P).T
        self.proj_weight_f32 = w_f32  # unpadded f32, kept for reference checks

        # Pad K and N to lane/MXU friendly multiples of 128 once, cast to bf16.
        K, N = w_f32.shape
        K_p = _round_up(K, 128)
        N_p = _round_up(N, 128)
        w_pad = jnp.pad(w_f32, ((0, K_p - K), (0, N_p - N)))
        self.proj_weight_bf16 = w_pad.astype(jnp.bfloat16)

    def _calculate_grid_thw(self, images):
        if images is None:
            return None
        batch_size, _, height, width = images.shape
        t_dim = 1
        h_dim = height // self.override_patch_size
        w_dim = width // self.override_patch_size
        return jnp.array(
            [[t_dim, h_dim, w_dim]] * batch_size, dtype=jnp.int32
        )

    def forward(self, input_ids=None, attention_mask=None, images=None,
                labels=None, **kwargs):
        image_grid_thw = None
        if images is not None and "image_grid_thw" not in kwargs:
            image_grid_thw = self._calculate_grid_thw(images)

        patch_embeds = None
        if images is not None:
            patch_embeds = patch_embed_forward(
                images,
                self.proj_weight_bf16,
                patch_size=self.override_patch_size,
                embed_dim=self.embed_dim,
            )

        # TODO(synk): the rest of Qwen2VLForConditionalGeneration (token
        # embedding merge, decoder layers, LM head, loss) is not reproduced.
        return {
            "patch_embeds": patch_embeds,          # [num_patches, embed_dim] bf16
            "image_grid_thw": image_grid_thw,      # [B, 3] int32
            "input_ids": input_ids,
            "attention_mask": attention_mask,
        }


if __name__ == "__main__":
    key = jax.random.PRNGKey(0)
    k_img1, k_img2, k_ids = jax.random.split(key, 3)

    model = QwenSamBackbonePallas(
        in_channels=3,
        embed_dim=128,
        override_patch_size=16,
        override_temporal_patch_size=1,
        seed=0,
    )
    P = model.override_patch_size
    seq = 8

    # ---------------- Pallas path: B=2, 256x256 -> M = 512 patches ----------
    B, C, H, W = 2, 3, 256, 256
    images = jax.random.normal(k_img1, (B, C, H, W), dtype=jnp.float32)
    input_ids = jax.random.randint(k_ids, (B, seq), 0, 1000, dtype=jnp.int32)
    attention_mask = jnp.ones((B, seq), dtype=jnp.int32)

    out = model.forward(
        input_ids=input_ids, attention_mask=attention_mask, images=images
    )
    patch_embeds = jax.block_until_ready(out["patch_embeds"])
    grid_thw = jax.block_until_ready(out["image_grid_thw"])

    Hg, Wg = H // P, W // P
    xr = images.reshape(B, C, Hg, P, Wg, P)
    xr = jnp.transpose(xr, (0, 2, 4, 1, 3, 5)).reshape(B * Hg * Wg, C * P * P)
    ref = xr @ model.proj_weight_f32

    assert patch_embeds.shape == (B * Hg * Wg, 128), patch_embeds.shape
    assert patch_embeds.dtype == jnp.bfloat16
    assert grid_thw.shape == (B, 3)
    assert bool(jnp.all(grid_thw == jnp.array([[1, Hg, Wg]] * B, jnp.int32)))
    max_err = float(jnp.max(jnp.abs(patch_embeds.astype(jnp.float32) - ref)))
    assert max_err < 5e-2, f"max abs err {max_err}"

    # ------------- tiny-M fallback path: B=2, 64x64 -> M = 32 ---------------
    B2, H2, W2 = 2, 64, 64
    images2 = jax.random.normal(k_img2, (B2, C, H2, W2), dtype=jnp.float32)
    out2 = model.forward(images=images2)
    pe2 = jax.block_until_ready(out2["patch_embeds"])
    gt2 = jax.block_until_ready(out2["image_grid_thw"])

    Hg2, Wg2 = H2 // P, W2 // P
    xr2 = images2.reshape(B2, C, Hg2, P, Wg2, P)
    xr2 = jnp.transpose(xr2, (0, 2, 4, 1, 3, 5)).reshape(
        B2 * Hg2 * Wg2, C * P * P
    )
    ref2 = xr2 @ model.proj_weight_f32

    assert pe2.shape == (B2 * Hg2 * Wg2, 128), pe2.shape
    assert bool(jnp.all(gt2 == jnp.array([[1, Hg2, Wg2]] * B2, jnp.int32)))
    max_err2 = float(jnp.max(jnp.abs(pe2.astype(jnp.float32) - ref2)))
    assert max_err2 < 5e-2, f"max abs err {max_err2}"

    print("KERNEL_OK")
</pallas_src>

<mosaic_0001>
module attributes {stable_mosaic.version = 11 : i64} {
  func.func @_patch_embed_matmul_kernel(%arg0: i32, %arg1: memref<512x768xbf16, #tpu.memory_space<vmem>>, %arg2: memref<768x128xbf16, #tpu.memory_space<vmem>>, %arg3: memref<512x128xbf16, #tpu.memory_space<vmem>>) attributes {dimension_semantics = [#tpu.dimension_semantics<parallel>], iteration_bounds = array<i64: 1>, scalar_prefetch = 0 : i64, scratch_operands = 0 : i64, tpu.core_type = #tpu.core_type<tc>, window_params = [{transform_indices = @transform_0, window_bounds = array<i64: 512, 768>}, {pipeline_mode = #tpu.pipeline_mode<synchronous>, transform_indices = @transform_1, window_bounds = array<i64: 768, 128>}, {transform_indices = @transform_2, window_bounds = array<i64: 512, 128>}]} {
    %c0 = arith.constant 0 : index
    %c0_0 = arith.constant 0 : index
    %0 = vector.load %arg1[%c0, %c0_0] : memref<512x768xbf16, #tpu.memory_space<vmem>>, vector<512x768xbf16>
    %c0_1 = arith.constant 0 : index
    %c0_2 = arith.constant 0 : index
    %1 = vector.load %arg2[%c0_1, %c0_2] : memref<768x128xbf16, #tpu.memory_space<vmem>>, vector<768x128xbf16>
    %cst = arith.constant dense<0.000000e+00> : vector<512x128xf32>
    %2 = tpu.matmul %0, %1, %cst {dimension_numbers = #tpu.dot_dimension_numbers<[1], [0], [0], [1], [0, 0, 1, 1], [], []>} : vector<512x768xbf16>, vector<768x128xbf16>, vector<512x128xf32> -> vector<512x128xf32>
    %3 = arith.truncf %2 : vector<512x128xf32> to vector<512x128xbf16>
    %c0_3 = arith.constant 0 : index
    %c0_4 = arith.constant 0 : index
    %4 = vector.load %arg3[%c0_3, %c0_4] : memref<512x128xbf16, #tpu.memory_space<vmem>>, vector<512x128xbf16>
    tpu.vector_store %arg3[%c0_3, %c0_4], %3 {strides = array<i32>} : memref<512x128xbf16, #tpu.memory_space<vmem>>, vector<512x128xbf16>,
    return
  }
  func.func @transform_0(%arg0: i32) -> (i32, i32) {
    %c0_i32 = arith.constant 0 : i32
    %c0_i32_0 = arith.constant 0 : i32
    return %arg0, %c0_i32 : i32, i32
  }
  func.func @transform_1(%arg0: i32) -> (i32, i32) {
    %c0_i32 = arith.constant 0 : i32
    %c0_i32_0 = arith.constant 0 : i32
    %c0_i32_1 = arith.constant 0 : i32
    return %c0_i32, %c0_i32_0 : i32, i32
  }
  func.func @transform_2(%arg0: i32) -> (i32, i32) {
    %c0_i32 = arith.constant 0 : i32
    %c0_i32_0 = arith.constant 0 : i32
    return %arg0, %c0_i32 : i32, i32
  }
}

</mosaic_0001>

<llo_original>
// kernel: patch_embed_forward.1
$region0: #{patch_embed_forward.1}
  #allocation0 [shape = 'u32[]', space=smem, size = 0x4, offset = 0x4, fixed_abs, tag = 'smem constant byte address 0x4 - core index']
  #allocation1 [shape = 'u32[144,128]{1,0:T(1,128)}', space=vmem, size = 0x12000, scoped, tag = 'internal scratch']
  %s0 = inlined_call_operand.vmem [shape: bf16[512,768], index: 0, kind: input, shape index: {}]
  %s1 = inlined_call_operand.vmem [shape: bf16[768,128], index: 1, kind: input, shape index: {}]
  %s2 = inlined_call_operand.hbm [shape: bf16[512,128], index: 2, kind: output, shape index: {}]
  %s3 = sld [smem:[#allocation0]]
  $region18: #{patch_embed_forward.1} parent=0
    _
  %s5 = ssub.s32 1, %s3
  %s6 = scalar_select 0, %s5, %s3
  $region1: #{patch_embed_forward.1} parent=0
    #allocation2 [shape = 'u8[131072]{0}', space=vmem, size = 0x20000, scoped, tag = 'output window, operand 0, single buffered']
    #allocation3 [shape = 's32[1]{0}', space=sflag, size = 0x4, scoped, tag = 'scoped memory for patch_embed_forward.1']
    %7 = vsyncpa [#allocation3], 0
    // Predicated region
    $region2: #{patch_embed_forward.1} parent=1 // pred_check
      _
    $region3: #{patch_embed_forward.1} parent=1 // pred_check_branch
      %9 = sbr.rel (0) target = $region5
    $region4: #{patch_embed_forward.1} parent=1 // pred_region
      _
    $region5: #{patch_embed_forward.1} parent=1 // pred_fallthru
      _
    // Predicated region
    $region6: #{patch_embed_forward.1} parent=1 // pred_check
      _
    $region7: #{patch_embed_forward.1} parent=1 // pred_check_branch
      %11 = sbr.rel (0) target = $region9
    $region8: #{patch_embed_forward.1} parent=1 // pred_region
      _
    $region9: #{patch_embed_forward.1} parent=1 // pred_fallthru
      _
    %v13 = vld [vmem:[%s0] sm:$0xff]
    %v14 = vld [vmem:[%s0 + $0x8] sm:$0xff]
    %v15 = vld [vmem:[%s0 + $0x10] sm:$0xff]
    %v16 = vld [vmem:[%s0 + $0x18] sm:$0xff]
    %v17 = vld [vmem:[%s0 + $0x20] sm:$0xff]
    %v18 = vld [vmem:[%s0 + $0x28] sm:$0xff]
    %v19 = vld [vmem:[%s0 + $0x30] sm:$0xff]
    %v20 = vld [vmem:[%s0 + $0x38] sm:$0xff]
    %v21 = vld [vmem:[%s0 + $0x40] sm:$0xff]
    %v22 = vld [vmem:[%s0 + $0x48] sm:$0xff]
    %v23 = vld [vmem:[%s0 + $0x50] sm:$0xff]
    %v24 = vld [vmem:[%s0 + $0x58] sm:$0xff]
    %v25 = vld [vmem:[%s0 + $0x60] sm:$0xff]
    %v26 = vld [vmem:[%s0 + $0x68] sm:$0xff]
    %v27 = vld [vmem:[%s0 + $0x70] sm:$0xff]
    %v28 = vld [vmem:[%s0 + $0x78] sm:$0xff]
    %v29 = vld [vmem:[%s0 + $0x80] sm:$0xff]
    %v30 = vld [vmem:[%s0 + $0x88] sm:$0xff]
    %v31 = vld [vmem:[%s0 + $0x90] sm:$0xff]
    %v32 = vld [vmem:[%s0 + $0x98] sm:$0xff]
    %v33 = vld [vmem:[%s0 + $0xa0] sm:$0xff]
    %v34 = vld [vmem:[%s0 + $0xa8] sm:$0xff]
    %v35 = vld [vmem:[%s0 + $0xb0] sm:$0xff]
    %v36 = vld [vmem:[%s0 + $0xb8] sm:$0xff]
    %v37 = vld [vmem:[%s0 + $0xc0] sm:$0xff]
    %v38 = vld [vmem:[%s0 + $0xc8] sm:$0xff]
    %v39 = vld [vmem:[%s0 + $0xd0] sm:$0xff]
    %v40 = vld [vmem:[%s0 + $0xd8] sm:$0xff]
    %v41 = vld [vmem:[%s0 + $0xe0] sm:$0xff]
    %v42 = vld [vmem:[%s0 + $0xe8] sm:$0xff]
    %v43 = vld [vmem:[%s0 + $0xf0] sm:$0xff]
    %v44 = vld [vmem:[%s0 + $0xf8] sm:$0xff]
    %v45 = vld [vmem:[%s0 + $0x100] sm:$0xff]
    %v46 = vld [vmem:[%s0 + $0x108] sm:$0xff]
    %v47 = vld [vmem:[%s0 + $0x110] sm:$0xff]
    %v48 = vld [vmem:[%s0 + $0x118] sm:$0xff]
    %v49 = vld [vmem:[%s0 + $0x120] sm:$0xff]
    %v50 = vld [vmem:[%s0 + $0x128] sm:$0xff]
    %v51 = vld [vmem:[%s0 + $0x130] sm:$0xff]
    %v52 = vld [vmem:[%s0 + $0x138] sm:$0xff]
    %v53 = vld [vmem:[%s0 + $0x140] sm:$0xff]
    %v54 = vld [vmem:[%s0 + $0x148] sm:$0xff]
    %v55 = vld [vmem:[%s0 + $0x150] sm:$0xff]
    %v56 = vld [vmem:[%s0 + $0x158] sm:$0xff]
    %v57 = vld [vmem:[%s0 + $0x160] sm:$0xff]
    %v58 = vld [vmem:[%s0 + $0x168] sm:$0xff]
    %v59 = vld [vmem:[%s0 + $0x170] sm:$0xff]
    %v60 = vld [vmem:[%s0 + $0x178] sm:$0xff]
    %v61 = vld [vmem:[%s0 + $0x180] sm:$0xff]
    %v62 = vld [vmem:[%s0 + $0x188] sm:$0xff]
    %v63 = vld [vmem:[%s0 + $0x190] sm:$0xff]
    %v64 = vld [vmem:[%s0 + $0x198] sm:$0xff]
    %v65 = vld [vmem:[%s0 + $0x1a0] sm:$0xff]
    %v66 = vld [vmem:[%s0 + $0x1a8] sm:$0xff]
    %v67 = vld [vmem:[%s0 + $0x1b0] sm:$0xff]
    %v68 = vld [vmem:[%s0 + $0x1b8] sm:$0xff]
    %v69 = vld [vmem:[%s0 + $0x1c0] sm:$0xff]
    %v70 = vld [vmem:[%s0 + $0x1c8] sm:$0xff]
    %v71 = vld [vmem:[%s0 + $0x1d0] sm:$0xff]
    %v72 = vld [vmem:[%s0 + $0x1d8] sm:$0xff]
    %v73 = vld [vmem:[%s0 + $0x1e0] sm:$0xff]
    %v74 = vld [vmem:[%s0 + $0x1e8] sm:$0xff]
    %v75 = vld [vmem:[%s0 + $0x1f0] sm:$0xff]
    %v76 = vld [vmem:[%s0 + $0x1f8] sm:$0xff]
    %v77 = vld [vmem:[%s0 + $0x200] sm:$0xff]
    %v78 = vld [vmem:[%s0 + $0x208] sm:$0xff]
    %v79 = vld [vmem:[%s0 + $0x210] sm:$0xff]
    %v80 = vld [vmem:[%s0 + $0x218] sm:$0xff]
    %v81 = vld [vmem:[%s0 + $0x220] sm:$0xff]
    %v82 = vld [vmem:[%s0 + $0x228] sm:$0xff]
    %v83 = vld [vmem:[%s0 + $0x230] sm:$0xff]
    %v84 = vld [vmem:[%s0 + $0x238] sm:$0xff]
    %v85 = vld [vmem:[%s0 + $0x240] sm:$0xff]
    %v86 = vld [vmem:[%s0 + $0x248] sm:$0xff]
    %v87 = vld [vmem:[%s0 + $0x250] sm:$0xff]
    %v88 = vld [vmem:[%s0 + $0x258] sm:$0xff]
    %v89 = vld [vmem:[%s0 + $0x260] sm:$0xff]
    %v90 = vld [vmem:[%s0 + $0x268] sm:$0xff]
    %v91 = vld [vmem:[%s0 + $0x270] sm:$0xff]
    %v92 = vld [vmem:[%s0 + $0x278] sm:$0xff]
    %v93 = vld [vmem:[%s0 + $0x280] sm:$0xff]
    %v94 = vld [vmem:[%s0 + $0x288] sm:$0xff]
    %v95 = vld [vmem:[%s0 + $0x290] sm:$0xff]
    %v96 = vld [vmem:[%s0 + $0x298] sm:$0xff]
    %v97 = vld [vmem:[%s0 + $0x2a0] sm:$0xff]
    %v98 = vld [vmem:[%s0 + $0x2a8] sm:$0xff]
    %v99 = vld [vmem:[%s0 + $0x2b0] sm:$0xff]
    %v100 = vld [vmem:[%s0 + $0x2b8] sm:$0xff]
    %v101 = vld [vmem:[%s0 + $0x2c0] sm:$0xff]
    %v102 = vld [vmem:[%s0 + $0x2c8] sm:$0xff]
    %v103 = vld [vmem:[%s0 + $0x2d0] sm:$0xff]
    %v104 = vld [vmem:[%s0 + $0x2d8] sm:$0xff]
    %v105 = vld [vmem:[%s0 + $0x2e0] sm:$0xff]
    %v106 = vld [vmem:[%s0 + $0x2e8] sm:$0xff]
    %v107 = vld [vmem:[%s0 + $0x2f0] sm:$0xff]
    %v108 = vld [vmem:[%s0 + $0x2f8] sm:$0xff]
    %v109 = vld [vmem:[%s0 + $0x300] sm:$0xff]
    %v110 = vld [vmem:[%s0 + $0x308] sm:$0xff]
    %v111 = vld [vmem:[%s0 + $0x310] sm:$0xff]
    %v112 = vld [vmem:[%s0 + $0x318] sm:$0xff]
    %v113 = vld [vmem:[%s0 + $0x320] sm:$0xff]
    %v114 = vld [vmem:[%s0 + $0x328] sm:$0xff]
    %v115 = vld [vmem:[%s0 + $0x330] sm:$0xff]
    %v116 = vld [vmem:[%s0 + $0x338] sm:$0xff]
    %v117 = vld [vmem:[%s0 + $0x340] sm:$0xff]
    %v118 = vld [vmem:[%s0 + $0x348] sm:$0xff]
    %v119 = vld [vmem:[%s0 + $0x350] sm:$0xff]
    %v120 = vld [vmem:[%s0 + $0x358] sm:$0xff]
    %v121 = vld [vmem:[%s0 + $0x360] sm:$0xff]
    %v122 = vld [vmem:[%s0 + $0x368] sm:$0xff]
    %v123 = vld [vmem:[%s0 + $0x370] sm:$0xff]
    %v124 = vld [vmem:[%s0 + $0x378] sm:$0xff]
    %v125 = vld [vmem:[%s0 + $0x380] sm:$0xff]
    %v126 = vld [vmem:[%s0 + $0x388] sm:$0xff]
    %v127 = vld [vmem:[%s0 + $0x390] sm:$0xff]
    %v128 = vld [vmem:[%s0 + $0x398] sm:$0xff]
    %v129 = vld [vmem:[%s0 + $0x3a0] sm:$0xff]
    %v130 = vld [vmem:[%s0 + $0x3a8] sm:$0xff]
    %v131 = vld [vmem:[%s0 + $0x3b0] sm:$0xff]
    %v132 = vld [vmem:[%s0 + $0x3b8] sm:$0xff]
    %v133 = vld [vmem:[%s0 + $0x3c0] sm:$0xff]
    %v134 = vld [vmem:[%s0 + $0x3c8] sm:$0xff]
    %v135 = vld [vmem:[%s0 + $0x3d0] sm:$0xff]
    %v136 = vld [vmem:[%s0 + $0x3d8] sm:$0xff]
    %v137 = vld [vmem:[%s0 + $0x3e0] sm:$0xff]
    %v138 = vld [vmem:[%s0 + $0x3e8] sm:$0xff]
    %v139 = vld [vmem:[%s0 + $0x3f0] sm:$0xff]
    %v140 = vld [vmem:[%s0 + $0x3f8] sm:$0xff]
    %v141 = vld [vmem:[%s0 + $0x400] sm:$0xff]
    %v142 = vld [vmem:[%s0 + $0x408] sm:$0xff]
    %v143 = vld [vmem:[%s0 + $0x410] sm:$0xff]
    %v144 = vld [vmem:[%s0 + $0x418] sm:$0xff]
    %v145 = vld [vmem:[%s0 + $0x420] sm:$0xff]
    %v146 = vld [vmem:[%s0 + $0x428] sm:$0xff]
    %v147 = vld [vmem:[%s0 + $0x430] sm:$0xff]
    %v148 = vld [vmem:[%s0 + $0x438] sm:$0xff]
    %v149 = vld [vmem:[%s0 + $0x440] sm:$0xff]
    %v150 = vld [vmem:[%s0 + $0x448] sm:$0xff]
    %v151 = vld [vmem:[%s0 + $0x450] sm:$0xff]
    %v152 = vld [vmem:[%s0 + $0x458] sm:$0xff]
    %v153 = vld [vmem:[%s0 + $0x460] sm:$0xff]
    %v154 = vld [vmem:[%s0 + $0x468] sm:$0xff]
    %v155 = vld [vmem:[%s0 + $0x470] sm:$0xff]
    %v156 = vld [vmem:[%s0 + $0x478] sm:$0xff]
    %v157 = vld [vmem:[%s0 + $0x480] sm:$0xff]
    %v158 = vld [vmem:[%s0 + $0x488] sm:$0xff]
    %v159 = vld [vmem:[%s0 + $0x490] sm:$0xff]
    %v160 = vld [vmem:[%s0 + $0x498] sm:$0xff]
    %v161 = vld [vmem:[%s0 + $0x4a0] sm:$0xff]
    %v162 = vld [vmem:[%s0 + $0x4a8] sm:$0xff]
    %v163 = vld [vmem:[%s0 + $0x4b0] sm:$0xff]
    %v164 = vld [vmem:[%s0 + $0x4b8] sm:$0xff]
    %v165 = vld [vmem:[%s0 + $0x4c0] sm:$0xff]
    %v166 = vld [vmem:[%s0 + $0x4c8] sm:$0xff]
    %v167 = vld [vmem:[%s0 + $0x4d0] sm:$0xff]
    %v168 = vld [vmem:[%s0 + $0x4d8] sm:$0xff]
    %v169 = vld [vmem:[%s0 + $0x4e0] sm:$0xff]
    %v170 = vld [vmem:[%s0 + $0x4e8] sm:$0xff]
    %v171 = vld [vmem:[%s0 + $0x4f0] sm:$0xff]
    %v172 = vld [vmem:[%s0 + $0x4f8] sm:$0xff]
    %v173 = vld [vmem:[%s0 + $0x500] sm:$0xff]
    %v174 = vld [vmem:[%s0 + $0x508] sm:$0xff]
    %v175 = vld [vmem:[%s0 + $0x510] sm:$0xff]
    %v176 = vld [vmem:[%s0 + $0x518] sm:$0xff]
    %v177 = vld [vmem:[%s0 + $0x520] sm:$0xff]
    %v178 = vld [vmem:[%s0 + $0x528] sm:$0xff]
    %v179 = vld [vmem:[%s0 + $0x530] sm:$0xff]
    %v180 = vld [vmem:[%s0 + $0x538] sm:$0xff]
    %v181 = vld [vmem:[%s0 + $0x540] sm:$0xff]
    %v182 = vld [vmem:[%s0 + $0x548] sm:$0xff]
    %v183 = vld [vmem:[%s0 + $0x550] sm:$0xff]
    %v184 = vld [vmem:[%s0 + $0x558] sm:$0xff]
    %v185 = vld [vmem:[%s0 + $0x560] sm:$0xff]
    %v186 = vld [vmem:[%s0 + $0x568] sm:$0xff]
    %v187 = vld [vmem:[%s0 + $0x570] sm:$0xff]
    %v188 = vld [vmem:[%s0 + $0x578] sm:$0xff]
    %v189 = vld [vmem:[%s0 + $0x580] sm:$0xff]
    %v190 = vld [vmem:[%s0 + $0x588] sm:$0xff]
    %v191 = vld [vmem:[%s0 + $0x590] sm:$0xff]
    %v192 = vld [vmem:[%s0 + $0x598] sm:$0xff]
    %v193 = vld [vmem:[%s0 + $0x5a0] sm:$0xff]
    %v194 = vld [vmem:[%s0 + $0x5a8] sm:$0xff]
    %v195 = vld [vmem:[%s0 + $0x5b0] sm:$0xff]
    %v196 = vld [vmem:[%s0 + $0x5b8] sm:$0xff]
    %v197 = vld [vmem:[%s0 + $0x5c0] sm:$0xff]
    %v198 = vld [vmem:[%s0 + $0x5c8] sm:$0xff]
    %v199 = vld [vmem:[%s0 + $0x5d0] sm:$0xff]
    %v200 = vld [vmem:[%s0 + $0x5d8] sm:$0xff]
    %v201 = vld [vmem:[%s0 + $0x5e0] sm:$0xff]
    %v202 = vld [vmem:[%s0 + $0x5e8] sm:$0xff]
    %v203 = vld [vmem:[%s0 + $0x5f0] sm:$0xff]
    %v204 = vld [vmem:[%s0 + $0x5f8] sm:$0xff]
    %v205 = vld [vmem:[%s1] sm:$0xf]
    %v206 = vld [vmem:[%s1 + $0x4] sm:$0xf]
    %v207 = vld [vmem:[%s1 + $0x8] sm:$0xf]
    %v208 = vld [vmem:[%s1 + $0xc] sm:$0xf]
    %v209 = vld [vmem:[%s1 + $0x10] sm:$0xf]
    %v210 = vld [vmem:[%s1 + $0x14] sm:$0xf]
    %v211 = vld [vmem:[%s1 + $0x18] sm:$0xf]
    %v212 = vld [vmem:[%s1 + $0x1c] sm:$0xf]
    %v213 = vld [vmem:[%s1 + $0x20] sm:$0xf]
    %v214 = vld [vmem:[%s1 + $0x24] sm:$0xf]
    %v215 = vld [vmem:[%s1 + $0x28] sm:$0xf]
    %v216 = vld [vmem:[%s1 + $0x2c] sm:$0xf]
    %v217 = vld [vmem:[%s1 + $0x30] sm:$0xf]
    %v218 = vld [vmem:[%s1 + $0x34] sm:$0xf]
    %v219 = vld [vmem:[%s1 + $0x38] sm:$0xf]
    %v220 = vld [vmem:[%s1 + $0x3c] sm:$0xf]
    %v221 = vld [vmem:[%s1 + $0x40] sm:$0xf]
    %v222 = vld [vmem:[%s1 + $0x44] sm:$0xf]
    %v223 = vld [vmem:[%s1 + $0x48] sm:$0xf]
    %v224 = vld [vmem:[%s1 + $0x4c] sm:$0xf]
    %v225 = vld [vmem:[%s1 + $0x50] sm:$0xf]
    %v226 = vld [vmem:[%s1 + $0x54] sm:$0xf]
    %v227 = vld [vmem:[%s1 + $0x58] sm:$0xf]
    %v228 = vld [vmem:[%s1 + $0x5c] sm:$0xf]
    %v229 = vld [vmem:[%s1 + $0x60] sm:$0xf]
    %v230 = vld [vmem:[%s1 + $0x64] sm:$0xf]
    %v231 = vld [vmem:[%s1 + $0x68] sm:$0xf]
    %v232 = vld [vmem:[%s1 + $0x6c] sm:$0xf]
    %v233 = vld [vmem:[%s1 + $0x70] sm:$0xf]
    %v234 = vld [vmem:[%s1 + $0x74] sm:$0xf]
    %v235 = vld [vmem:[%s1 + $0x78] sm:$0xf]
    %v236 = vld [vmem:[%s1 + $0x7c] sm:$0xf]
    %v237 = vld [vmem:[%s1 + $0x80] sm:$0xf]
    %v238 = vld [vmem:[%s1 + $0x84] sm:$0xf]
    %v239 = vld [vmem:[%s1 + $0x88] sm:$0xf]
    %v240 = vld [vmem:[%s1 + $0x8c] sm:$0xf]
    %v241 = vld [vmem:[%s1 + $0x90] sm:$0xf]
    %v242 = vld [vmem:[%s1 + $0x94] sm:$0xf]
    %v243 = vld [vmem:[%s1 + $0x98] sm:$0xf]
    %v244 = vld [vmem:[%s1 + $0x9c] sm:$0xf]
    %v245 = vld [vmem:[%s1 + $0xa0] sm:$0xf]
    %v246 = vld [vmem:[%s1 + $0xa4] sm:$0xf]
    %v247 = vld [vmem:[%s1 + $0xa8] sm:$0xf]
    %v248 = vld [vmem:[%s1 + $0xac] sm:$0xf]
    %v249 = vld [vmem:[%s1 + $0xb0] sm:$0xf]
    %v250 = vld [vmem:[%s1 + $0xb4] sm:$0xf]
    %v251 = vld [vmem:[%s1 + $0xb8] sm:$0xf]
    %v252 = vld [vmem:[%s1 + $0xbc] sm:$0xf]
    %v253 = vld [vmem:[%s1 + $0xc0] sm:$0xf]
    %v254 = vld [vmem:[%s1 + $0xc4] sm:$0xf]
    %v255 = vld [vmem:[%s1 + $0xc8] sm:$0xf]
    %v256 = vld [vmem:[%s1 + $0xcc] sm:$0xf]
    %v257 = vld [vmem:[%s1 + $0xd0] sm:$0xf]
    %v258 = vld [vmem:[%s1 + $0xd4] sm:$0xf]
    %v259 = vld [vmem:[%s1 + $0xd8] sm:$0xf]
    %v260 = vld [vmem:[%s1 + $0xdc] sm:$0xf]
    %v261 = vld [vmem:[%s1 + $0xe0] sm:$0xf]
    %v262 = vld [vmem:[%s1 + $0xe4] sm:$0xf]
    %v263 = vld [vmem:[%s1 + $0xe8] sm:$0xf]
    %v264 = vld [vmem:[%s1 + $0xec] sm:$0xf]
    %v265 = vld [vmem:[%s1 + $0xf0] sm:$0xf]
    %v266 = vld [vmem:[%s1 + $0xf4] sm:$0xf]
    %v267 = vld [vmem:[%s1 + $0xf8] sm:$0xf]
    %v268 = vld [vmem:[%s1 + $0xfc] sm:$0xf]
    %v269 = vld [vmem:[%s1 + $0x100] sm:$0xf]
    %v270 = vld [vmem:[%s1 + $0x104] sm:$0xf]
    %v271 = vld [vmem:[%s1 + $0x108] sm:$0xf]
    %v272 = vld [vmem:[%s1 + $0x10c] sm:$0xf]
    %v273 = vld [vmem:[%s1 + $0x110] sm:$0xf]
    %v274 = vld [vmem:[%s1 + $0x114] sm:$0xf]
    %v275 = vld [vmem:[%s1 + $0x118] sm:$0xf]
    %v276 = vld [vmem:[%s1 + $0x11c] sm:$0xf]
    %v277 = vld [vmem:[%s1 + $0x120] sm:$0xf]
    %v278 = vld [vmem:[%s1 + $0x124] sm:$0xf]
    %v279 = vld [vmem:[%s1 + $0x128] sm:$0xf]
    %v280 = vld [vmem:[%s1 + $0x12c] sm:$0xf]
    %v281 = vld [vmem:[%s1 + $0x130] sm:$0xf]
    %v282 = vld [vmem:[%s1 + $0x134] sm:$0xf]
    %v283 = vld [vmem:[%s1 + $0x138] sm:$0xf]
    %v284 = vld [vmem:[%s1 + $0x13c] sm:$0xf]
    %v285 = vld [vmem:[%s1 + $0x140] sm:$0xf]
    %v286 = vld [vmem:[%s1 + $0x144] sm:$0xf]
    %v287 = vld [vmem:[%s1 + $0x148] sm:$0xf]
    %v288 = vld [vmem:[%s1 + $0x14c] sm:$0xf]
    %v289 = vld [vmem:[%s1 + $0x150] sm:$0xf]
    %v290 = vld [vmem:[%s1 + $0x154] sm:$0xf]
    %v291 = vld [vmem:[%s1 + $0x158] sm:$0xf]
    %v292 = vld [vmem:[%s1 + $0x15c] sm:$0xf]
    %v293 = vld [vmem:[%s1 + $0x160] sm:$0xf]
    %v294 = vld [vmem:[%s1 + $0x164] sm:$0xf]
    %v295 = vld [vmem:[%s1 + $0x168] sm:$0xf]
    %v296 = vld [vmem:[%s1 + $0x16c] sm:$0xf]
    %v297 = vld [vmem:[%s1 + $0x170] sm:$0xf]
    %v298 = vld [vmem:[%s1 + $0x174] sm:$0xf]
    %v299 = vld [vmem:[%s1 + $0x178] sm:$0xf]
    %v300 = vld [vmem:[%s1 + $0x17c] sm:$0xf]
    %v493 = vunpack.c.l.b16 %v13
    %v494 = vunpack.c.h.b16 %v13
    %v495 = vunpack.c.l.b16 %v14
    %v496 = vunpack.c.h.b16 %v14
    %v497 = vunpack.c.l.b16 %v15
    %v498 = vunpack.c.h.b16 %v15
    %v499 = vunpack.c.l.b16 %v16
    %v500 = vunpack.c.h.b16 %v16
    %v501 = vunpack.c.l.b16 %v17
    %v502 = vunpack.c.h.b16 %v17
    %v503 = vunpack.c.l.b16 %v18
    %v504 = vunpack.c.h.b16 %v18
    %v505 = vunpack.c.l.b16 %v19
    %v506 = vunpack.c.h.b16 %v19
    %v507 = vunpack.c.l.b16 %v20
    %v508 = vunpack.c.h.b16 %v20
    %v509 = vunpack.c.l.b16 %v21
    %v510 = vunpack.c.h.b16 %v21
    %v511 = vunpack.c.l.b16 %v22
    %v512 = vunpack.c.h.b16 %v22
    %v513 = vunpack.c.l.b16 %v23
    %v514 = vunpack.c.h.b16 %v23
    %v515 = vunpack.c.l.b16 %v24
    %v516 = vunpack.c.h.b16 %v24
    %v517 = vunpack.c.l.b16 %v25
    %v518 = vunpack.c.h.b16 %v25
    %v519 = vunpack.c.l.b16 %v26
    %v520 = vunpack.c.h.b16 %v26
    %v521 = vunpack.c.l.b16 %v27
    %v522 = vunpack.c.h.b16 %v27
    %v523 = vunpack.c.l.b16 %v28
    %v524 = vunpack.c.h.b16 %v28
    %v525 = vunpack.c.l.b16 %v29
    %v526 = vunpack.c.h.b16 %v29
    %v527 = vunpack.c.l.b16 %v30
    %v528 = vunpack.c.h.b16 %v30
    %v529 = vunpack.c.l.b16 %v31
    %v530 = vunpack.c.h.b16 %v31
    %v531 = vunpack.c.l.b16 %v32
    %v532 = vunpack.c.h.b16 %v32
    %v533 = vunpack.c.l.b16 %v33
    %v534 = vunpack.c.h.b16 %v33
    %v535 = vunpack.c.l.b16 %v34
    %v536 = vunpack.c.h.b16 %v34
    %v537 = vunpack.c.l.b16 %v35
    %v538 = vunpack.c.h.b16 %v35
    %v539 = vunpack.c.l.b16 %v36
    %v540 = vunpack.c.h.b16 %v36
    %v541 = vunpack.c.l.b16 %v37
    %v542 = vunpack.c.h.b16 %v37
    %v543 = vunpack.c.l.b16 %v38
    %v544 = vunpack.c.h.b16 %v38
    %v545 = vunpack.c.l.b16 %v39
    %v546 = vunpack.c.h.b16 %v39
    %v547 = vunpack.c.l.b16 %v40
    %v548 = vunpack.c.h.b16 %v40
    %v549 = vunpack.c.l.b16 %v41
    %v550 = vunpack.c.h.b16 %v41
    %v551 = vunpack.c.l.b16 %v42
    %v552 = vunpack.c.h.b16 %v42
    %v553 = vunpack.c.l.b16 %v43
    %v554 = vunpack.c.h.b16 %v43
    %v555 = vunpack.c.l.b16 %v44
    %v556 = vunpack.c.h.b16 %v44
    %v557 = vunpack.c.l.b16 %v45
    %v558 = vunpack.c.h.b16 %v45
    %v559 = vunpack.c.l.b16 %v46
    %v560 = vunpack.c.h.b16 %v46
    %v561 = vunpack.c.l.b16 %v47
    %v562 = vunpack.c.h.b16 %v47
    %v563 = vunpack.c.l.b16 %v48
    %v564 = vunpack.c.h.b16 %v48
    %v565 = vunpack.c.l.b16 %v49
    %v566 = vunpack.c.h.b16 %v49
    %v567 = vunpack.c.l.b16 %v50
    %v568 = vunpack.c.h.b16 %v50
    %v569 = vunpack.c.l.b16 %v51
    %v570 = vunpack.c.h.b16 %v51
    %v571 = vunpack.c.l.b16 %v52
    %v572 = vunpack.c.h.b16 %v52
    %v573 = vunpack.c.l.b16 %v53
    %v574 = vunpack.c.h.b16 %v53
    %v575 = vunpack.c.l.b16 %v54
    %v576 = vunpack.c.h.b16 %v54
    %v577 = vunpack.c.l.b16 %v55
    %v578 = vunpack.c.h.b16 %v55
    %v579 = vunpack.c.l.b16 %v56
    %v580 = vunpack.c.h.b16 %v56
    %v581 = vunpack.c.l.b16 %v57
    %v582 = vunpack.c.h.b16 %v57
    %v583 = vunpack.c.l.b16 %v58
    %v584 = vunpack.c.h.b16 %v58
    %v585 = vunpack.c.l.b16 %v59
    %v586 = vunpack.c.h.b16 %v59
    %v587 = vunpack.c.l.b16 %v60
    %v588 = vunpack.c.h.b16 %v60
    %v589 = vunpack.c.l.b16 %v61
    %v590 = vunpack.c.h.b16 %v61
    %v591 = vunpack.c.l.b16 %v62
    %v592 = vunpack.c.h.b16 %v62
    %v593 = vunpack.c.l.b16 %v63
    %v594 = vunpack.c.h.b16 %v63
    %v595 = vunpack.c.l.b16 %v64
    %v596 = vunpack.c.h.b16 %v64
    %v597 = vunpack.c.l.b16 %v65
    %v598 = vunpack.c.h.b16 %v65
    %v599 = vunpack.c.l.b16 %v66
    %v600 = vunpack.c.h.b16 %v66
    %v601 = vunpack.c.l.b16 %v67
    %v602 = vunpack.c.h.b16 %v67
    %v603 = vunpack.c.l.b16 %v68
    %v604 = vunpack.c.h.b16 %v68
    %v605 = vunpack.c.l.b16 %v69
    %v606 = vunpack.c.h.b16 %v69
    %v607 = vunpack.c.l.b16 %v70
    %v608 = vunpack.c.h.b16 %v70
    %v609 = vunpack.c.l.b16 %v71
    %v610 = vunpack.c.h.b16 %v71
    %v611 = vunpack.c.l.b16 %v72
    %v612 = vunpack.c.h.b16 %v72
    %v613 = vunpack.c.l.b16 %v73
    %v614 = vunpack.c.h.b16 %v73
    %v615 = vunpack.c.l.b16 %v74
    %v616 = vunpack.c.h.b16 %v74
    %v617 = vunpack.c.l.b16 %v75
    %v618 = vunpack.c.h.b16 %v75
    %v619 = vunpack.c.l.b16 %v76
    %v620 = vunpack.c.h.b16 %v76
    %v621 = vunpack.c.l.b16 %v77
    %v622 = vunpack.c.h.b16 %v77
    %v623 = vunpack.c.l.b16 %v78
    %v624 = vunpack.c.h.b16 %v78
    %v625 = vunpack.c.l.b16 %v79
    %v626 = vunpack.c.h.b16 %v79
    %v627 = vunpack.c.l.b16 %v80
    %v628 = vunpack.c.h.b16 %v80
    %v629 = vunpack.c.l.b16 %v81
    %v630 = vunpack.c.h.b16 %v81
    %v631 = vunpack.c.l.b16 %v82
    %v632 = vunpack.c.h.b16 %v82
    %v633 = vunpack.c.l.b16 %v83
    %v634 = vunpack.c.h.b16 %v83
    %v635 = vunpack.c.l.b16 %v84
    %v636 = vunpack.c.h.b16 %v84
    %v637 = vunpack.c.l.b16 %v85
    %v638 = vunpack.c.h.b16 %v85
    %v639 = vunpack.c.l.b16 %v86
    %v640 = vunpack.c.h.b16 %v86
    %v641 = vunpack.c.l.b16 %v87
    %v642 = vunpack.c.h.b16 %v87
    %v643 = vunpack.c.l.b16 %v88
    %v644 = vunpack.c.h.b16 %v88
    %v645 = vunpack.c.l.b16 %v89
    %v646 = vunpack.c.h.b16 %v89
    %v647 = vunpack.c.l.b16 %v90
    %v648 = vunpack.c.h.b16 %v90
    %v649 = vunpack.c.l.b16 %v91
    %v650 = vunpack.c.h.b16 %v91
    %v651 = vunpack.c.l.b16 %v92
    %v652 = vunpack.c.h.b16 %v92
    %v653 = vunpack.c.l.b16 %v93
    %v654 = vunpack.c.h.b16 %v93
    %v655 = vunpack.c.l.b16 %v94
    %v656 = vunpack.c.h.b16 %v94
    %v657 = vunpack.c.l.b16 %v95
    %v658 = vunpack.c.h.b16 %v95
    %v659 = vunpack.c.l.b16 %v96
    %v660 = vunpack.c.h.b16 %v96
    %v661 = vunpack.c.l.b16 %v97
    %v662 = vunpack.c.h.b16 %v97
    %v663 = vunpack.c.l.b16 %v98
    %v664 = vunpack.c.h.b16 %v98
    %v665 = vunpack.c.l.b16 %v99
    %v666 = vunpack.c.h.b16 %v99
    %v667 = vunpack.c.l.b16 %v100
    %v668 = vunpack.c.h.b16 %v100
    %v669 = vunpack.c.l.b16 %v101
    %v670 = vunpack.c.h.b16 %v101
    %v671 = vunpack.c.l.b16 %v102
    %v672 = vunpack.c.h.b16 %v102
    %v673 = vunpack.c.l.b16 %v103
    %v674 = vunpack.c.h.b16 %v103
    %v675 = vunpack.c.l.b16 %v104
    %v676 = vunpack.c.h.b16 %v104
    %v677 = vunpack.c.l.b16 %v105
    %v678 = vunpack.c.h.b16 %v105
    %v679 = vunpack.c.l.b16 %v106
    %v680 = vunpack.c.h.b16 %v106
    %v681 = vunpack.c.l.b16 %v107
    %v682 = vunpack.c.h.b16 %v107
    %v683 = vunpack.c.l.b16 %v108
    %v684 = vunpack.c.h.b16 %v108
    %v685 = vunpack.c.l.b16 %v109
    %v686 = vunpack.c.h.b16 %v109
    %v687 = vunpack.c.l.b16 %v110
    %v688 = vunpack.c.h.b16 %v110
    %v689 = vunpack.c.l.b16 %v111
    %v690 = vunpack.c.h.b16 %v111
    %v691 = vunpack.c.l.b16 %v112
    %v692 = vunpack.c.h.b16 %v112
    %v693 = vunpack.c.l.b16 %v113
    %v694 = vunpack.c.h.b16 %v113
    %v695 = vunpack.c.l.b16 %v114
    %v696 = vunpack.c.h.b16 %v114
    %v697 = vunpack.c.l.b16 %v115
    %v698 = vunpack.c.h.b16 %v115
    %v699 = vunpack.c.l.b16 %v116
    %v700 = vunpack.c.h.b16 %v116
    %v701 = vunpack.c.l.b16 %v117
    %v702 = vunpack.c.h.b16 %v117
    %v703 = vunpack.c.l.b16 %v118
    %v704 = vunpack.c.h.b16 %v118
    %v705 = vunpack.c.l.b16 %v119
    %v706 = vunpack.c.h.b16 %v119
    %v707 = vunpack.c.l.b16 %v120
    %v708 = vunpack.c.h.b16 %v120
    %v709 = vunpack.c.l.b16 %v121
    %v710 = vunpack.c.h.b16 %v121
    %v711 = vunpack.c.l.b16 %v122
    %v712 = vunpack.c.h.b16 %v122
    %v713 = vunpack.c.l.b16 %v123
    %v714 = vunpack.c.h.b16 %v123
    %v715 = vunpack.c.l.b16 %v124
    %v716 = vunpack.c.h.b16 %v124
    %v717 = vunpack.c.l.b16 %v125
    %v718 = vunpack.c.h.b16 %v125
    %v719 = vunpack.c.l.b16 %v126
    %v720 = vunpack.c.h.b16 %v126
    %v721 = vunpack.c.l.b16 %v127
    %v722 = vunpack.c.h.b16 %v127
    %v723 = vunpack.c.l.b16 %v128
    %v724 = vunpack.c.h.b16 %v128
    %v725 = vunpack.c.l.b16 %v129
    %v726 = vunpack.c.h.b16 %v129
    %v727 = vunpack.c.l.b16 %v130
    %v728 = vunpack.c.h.b16 %v130
    %v729 = vunpack.c.l.b16 %v131
    %v730 = vunpack.c.h.b16 %v131
    %v731 = vunpack.c.l.b16 %v132
    %v732 = vunpack.c.h.b16 %v132
    %v733 = vunpack.c.l.b16 %v133
    %v734 = vunpack.c.h.b16 %v133
    %v735 = vunpack.c.l.b16 %v134
    %v736 = vunpack.c.h.b16 %v134
    %v737 = vunpack.c.l.b16 %v135
    %v738 = vunpack.c.h.b16 %v135
    %v739 = vunpack.c.l.b16 %v136
    %v740 = vunpack.c.h.b16 %v136
    %v741 = vunpack.c.l.b16 %v137
    %v742 = vunpack.c.h.b16 %v137
    %v743 = vunpack.c.l.b16 %v138
    %v744 = vunpack.c.h.b16 %v138
    %v745 = vunpack.c.l.b16 %v139
    %v746 = vunpack.c.h.b16 %v139
    %v747 = vunpack.c.l.b16 %v140
    %v748 = vunpack.c.h.b16 %v140
    %v749 = vunpack.c.l.b16 %v141
    %v750 = vunpack.c.h.b16 %v141
    %v751 = vunpack.c.l.b16 %v142
    %v752 = vunpack.c.h.b16 %v142
    %v753 = vunpack.c.l.b16 %v143
    %v754 = vunpack.c.h.b16 %v143
    %v755 = vunpack.c.l.b16 %v144
    %v756 = vunpack.c.h.b16 %v144
    %v757 = vunpack.c.l.b16 %v145
    %v758 = vunpack.c.h.b16 %v145
    %v759 = vunpack.c.l.b16 %v146
    %v760 = vunpack.c.h.b16 %v146
    %v761 = vunpack.c.l.b16 %v147
    %v762 = vunpack.c.h.b16 %v147
    %v763 = vunpack.c.l.b16 %v148
    %v764 = vunpack.c.h.b16 %v148
    %v765 = vunpack.c.l.b16 %v149
    %v766 = vunpack.c.h.b16 %v149
    %v767 = vunpack.c.l.b16 %v150
    %v768 = vunpack.c.h.b16 %v150
    %v769 = vunpack.c.l.b16 %v151
    %v770 = vunpack.c.h.b16 %v151
    %v771 = vunpack.c.l.b16 %v152
    %v772 = vunpack.c.h.b16 %v152
    %v773 = vunpack.c.l.b16 %v153
    %v774 = vunpack.c.h.b16 %v153
    %v775 = vunpack.c.l.b16 %v154
    %v776 = vunpack.c.h.b16 %v154
    %v777 = vunpack.c.l.b16 %v155
    %v778 = vunpack.c.h.b16 %v155
    %v779 = vunpack.c.l.b16 %v156
    %v780 = vunpack.c.h.b16 %v156
    %v781 = vunpack.c.l.b16 %v157
    %v782 = vunpack.c.h.b16 %v157
    %v783 = vunpack.c.l.b16 %v158
    %v784 = vunpack.c.h.b16 %v158
    %v785 = vunpack.c.l.b16 %v159
    %v786 = vunpack.c.h.b16 %v159
    %v787 = vunpack.c.l.b16 %v160
    %v788 = vunpack.c.h.b16 %v160
    %v789 = vunpack.c.l.b16 %v161
    %v790 = vunpack.c.h.b16 %v161
    %v791 = vunpack.c.l.b16 %v162
    %v792 = vunpack.c.h.b16 %v162
    %v793 = vunpack.c.l.b16 %v163
    %v794 = vunpack.c.h.b16 %v163
    %v795 = vunpack.c.l.b16 %v164
    %v796 = vunpack.c.h.b16 %v164
    %v797 = vunpack.c.l.b16 %v165
    %v798 = vunpack.c.h.b16 %v165
    %v799 = vunpack.c.l.b16 %v166
    %v800 = vunpack.c.h.b16 %v166
    %v801 = vunpack.c.l.b16 %v167
    %v802 = vunpack.c.h.b16 %v167
    %v803 = vunpack.c.l.b16 %v168
    %v804 = vunpack.c.h.b16 %v168
    %v805 = vunpack.c.l.b16 %v169
    %v806 = vunpack.c.h.b16 %v169
    %v807 = vunpack.c.l.b16 %v170
    %v808 = vunpack.c.h.b16 %v170
    %v809 = vunpack.c.l.b16 %v171
    %v810 = vunpack.c.h.b16 %v171
    %v811 = vunpack.c.l.b16 %v172
    %v812 = vunpack.c.h.b16 %v172
    %v813 = vunpack.c.l.b16 %v173
    %v814 = vunpack.c.h.b16 %v173
    %v815 = vunpack.c.l.b16 %v174
    %v816 = vunpack.c.h.b16 %v174
    %v817 = vunpack.c.l.b16 %v175
    %v818 = vunpack.c.h.b16 %v175
    %v819 = vunpack.c.l.b16 %v176
    %v820 = vunpack.c.h.b16 %v176
    %v821 = vunpack.c.l.b16 %v177
    %v822 = vunpack.c.h.b16 %v177
    %v823 = vunpack.c.l.b16 %v178
    %v824 = vunpack.c.h.b16 %v178
    %v825 = vunpack.c.l.b16 %v179
    %v826 = vunpack.c.h.b16 %v179
    %v827 = vunpack.c.l.b16 %v180
    %v828 = vunpack.c.h.b16 %v180
    %v829 = vunpack.c.l.b16 %v181
    %v830 = vunpack.c.h.b16 %v181
    %v831 = vunpack.c.l.b16 %v182
    %v832 = vunpack.c.h.b16 %v182
    %v833 = vunpack.c.l.b16 %v183
    %v834 = vunpack.c.h.b16 %v183
    %v835 = vunpack.c.l.b16 %v184
    %v836 = vunpack.c.h.b16 %v184
    %v837 = vunpack.c.l.b16 %v185
    %v838 = vunpack.c.h.b16 %v185
    %v839 = vunpack.c.l.b16 %v186
    %v840 = vunpack.c.h.b16 %v186
    %v841 = vunpack.c.l.b16 %v187
    %v842 = vunpack.c.h.b16 %v187
    %v843 = vunpack.c.l.b16 %v188
    %v844 = vunpack.c.h.b16 %v188
    %v845 = vunpack.c.l.b16 %v189
    %v846 = vunpack.c.h.b16 %v189
    %v847 = vunpack.c.l.b16 %v190
    %v848 = vunpack.c.h.b16 %v190
    %v849 = vunpack.c.l.b16 %v191
    %v850 = vunpack.c.h.b16 %v191
    %v851 = vunpack.c.l.b16 %v192
    %v852 = vunpack.c.h.b16 %v192
    %v853 = vunpack.c.l.b16 %v193
    %v854 = vunpack.c.h.b16 %v193
    %v855 = vunpack.c.l.b16 %v194
    %v856 = vunpack.c.h.b16 %v194
    %v857 = vunpack.c.l.b16 %v195
    %v858 = vunpack.c.h.b16 %v195
    %v859 = vunpack.c.l.b16 %v196
    %v860 = vunpack.c.h.b16 %v196
    %v861 = vunpack.c.l.b16 %v197
    %v862 = vunpack.c.h.b16 %v197
    %v863 = vunpack.c.l.b16 %v198
    %v864 = vunpack.c.h.b16 %v198
    %v865 = vunpack.c.l.b16 %v199
    %v866 = vunpack.c.h.b16 %v199
    %v867 = vunpack.c.l.b16 %v200
    %v868 = vunpack.c.h.b16 %v200
    %v869 = vunpack.c.l.b16 %v201
    %v870 = vunpack.c.h.b16 %v201
    %v871 = vunpack.c.l.b16 %v202
    %v872 = vunpack.c.h.b16 %v202
    %v873 = vunpack.c.l.b16 %v203
    %v874 = vunpack.c.h.b16 %v203
    %v875 = vunpack.c.l.b16 %v204
    %v876 = vunpack.c.h.b16 %v204
    %v877 = vpack.c.b16 %v499, %v493
    %v878 = vpack.c.b16 %v500, %v494
    %v879 = vpack.c.b16 %v501, %v495
    %v880 = vpack.c.b16 %v502, %v496
    %v881 = vpack.c.b16 %v503, %v497
    %v882 = vpack.c.b16 %v504, %v498
    %v883 = vpack.c.b16 %v511, %v505
    %v884 = vpack.c.b16 %v512, %v506
    %v885 = vpack.c.b16 %v513, %v507
    %v886 = vpack.c.b16 %v514, %v508
    %v887 = vpack.c.b16 %v515, %v509
    %v888 = vpack.c.b16 %v516, %v510
    %v889 = vpack.c.b16 %v523, %v517
    %v890 = vpack.c.b16 %v524, %v518
    %v891 = vpack.c.b16 %v525, %v519
    %v892 = vpack.c.b16 %v526, %v520
    %v893 = vpack.c.b16 %v527, %v521
    %v894 = vpack.c.b16 %v528, %v522
    %v895 = vpack.c.b16 %v535, %v529
    %v896 = vpack.c.b16 %v536, %v530
    %v897 = vpack.c.b16 %v537, %v531
    %v898 = vpack.c.b16 %v538, %v532
    %v899 = vpack.c.b16 %v539, %v533
    %v900 = vpack.c.b16 %v540, %v534
    %v901 = vpack.c.b16 %v547, %v541
    %v902 = vpack.c.b16 %v548, %v542
    %v903 = vpack.c.b16 %v549, %v543
    %v904 = vpack.c.b16 %v550, %v544
    %v905 = vpack.c.b16 %v551, %v545
    %v906 = vpack.c.b16 %v552, %v546
    %v907 = vpack.c.b16 %v559, %v553
    %v908 = vpack.c.b16 %v560, %v554
    %v909 = vpack.c.b16 %v561, %v555
    %v910 = vpack.c.b16 %v562, %v556
    %v911 = vpack.c.b16 %v563, %v557
    %v912 = vpack.c.b16 %v564, %v558
    %v913 = vpack.c.b16 %v571, %v565
    %v914 = vpack.c.b16 %v572, %v566
    %v915 = vpack.c.b16 %v573, %v567
    %v916 = vpack.c.b16 %v574, %v568
    %v917 = vpack.c.b16 %v575, %v569
    %v918 = vpack.c.b16 %v576, %v570
    %v919 = vpack.c.b16 %v583, %v577
    %v920 = vpack.c.b16 %v584, %v578
    %v921 = vpack.c.b16 %v585, %v579
    %v922 = vpack.c.b16 %v586, %v580
    %v923 = vpack.c.b16 %v587, %v581
    %v924 = vpack.c.b16 %v588, %v582
    %v925 = vpack.c.b16 %v595, %v589
    %v926 = vpack.c.b16 %v596, %v590
    %v927 = vpack.c.b16 %v597, %v591
    %v928 = vpack.c.b16 %v598, %v592
    %v929 = vpack.c.b16 %v599, %v593
    %v930 = vpack.c.b16 %v600, %v594
    %v931 = vpack.c.b16 %v607, %v601
    %v932 = vpack.c.b16 %v608, %v602
    %v933 = vpack.c.b16 %v609, %v603
    %v934 = vpack.c.b16 %v610, %v604
    %v935 = vpack.c.b16 %v611, %v605
    %v936 = vpack.c.b16 %v612, %v606
    %v937 = vpack.c.b16 %v619, %v613
    %v938 = vpack.c.b16 %v620, %v614
    %v939 = vpack.c.b16 %v621, %v615
    %v940 = vpack.c.b16 %v622, %v616
    %v941 = vpack.c.b16 %v623, %v617
    %v942 = vpack.c.b16 %v624, %v618
    %v943 = vpack.c.b16 %v631, %v625
    %v944 = vpack.c.b16 %v632, %v626
    %v945 = vpack.c.b16 %v633, %v627
    %v946 = vpack.c.b16 %v634, %v628
    %v947 = vpack.c.b16 %v635, %v629
    %v948 = vpack.c.b16 %v636, %v630
    %v949 = vpack.c.b16 %v643, %v637
    %v950 = vpack.c.b16 %v644, %v638
    %v951 = vpack.c.b16 %v645, %v639
    %v952 = vpack.c.b16 %v646, %v640
    %v953 = vpack.c.b16 %v647, %v641
    %v954 = vpack.c.b16 %v648, %v642
    %v955 = vpack.c.b16 %v655, %v649
    %v956 = vpack.c.b16 %v656, %v650
    %v957 = vpack.c.b16 %v657, %v651
    %v958 = vpack.c.b16 %v658, %v652
    %v959 = vpack.c.b16 %v659, %v653
    %v960 = vpack.c.b16 %v660, %v654
    %v961 = vpack.c.b16 %v667, %v661
    %v962 = vpack.c.b16 %v668, %v662
    %v963 = vpack.c.b16 %v669, %v663
    %v964 = vpack.c.b16 %v670, %v664
    %v965 = vpack.c.b16 %v671, %v665
    %v966 = vpack.c.b16 %v672, %v666
    %v967 = vpack.c.b16 %v679, %v673
    %v968 = vpack.c.b16 %v680, %v674
    %v969 = vpack.c.b16 %v681, %v675
    %v970 = vpack.c.b16 %v682, %v676
    %v971 = vpack.c.b16 %v683, %v677
    %v972 = vpack.c.b16 %v684, %v678
    %v973 = vpack.c.b16 %v691, %v685
    %v974 = vpack.c.b16 %v692, %v686
    %v975 = vpack.c.b16 %v693, %v687
    %v976 = vpack.c.b16 %v694, %v688
    %v977 = vpack.c.b16 %v695, %v689
    %v978 = vpack.c.b16 %v696, %v690
    %v979 = vpack.c.b16 %v703, %v697
    %v980 = vpack.c.b16 %v704, %v698
    %v981 = vpack.c.b16 %v705, %v699
    %v982 = vpack.c.b16 %v706, %v700
    %v983 = vpack.c.b16 %v707, %v701
    %v984 = vpack.c.b16 %v708, %v702
    %v985 = vpack.c.b16 %v715, %v709
    %v986 = vpack.c.b16 %v716, %v710
    %v987 = vpack.c.b16 %v717, %v711
    %v988 = vpack.c.b16 %v718, %v712
    %v989 = vpack.c.b16 %v719, %v713
    %v990 = vpack.c.b16 %v720, %v714
    %v991 = vpack.c.b16 %v727, %v721
    %v992 = vpack.c.b16 %v728, %v722
    %v993 = vpack.c.b16 %v729, %v723
    %v994 = vpack.c.b16 %v730, %v724
    %v995 = vpack.c.b16 %v731, %v725
    %v996 = vpack.c.b16 %v732, %v726
    %v997 = vpack.c.b16 %v739, %v733
    %v998 = vpack.c.b16 %v740, %v734
    %v999 = vpack.c.b16 %v741, %v735
    %v1000 = vpack.c.b16 %v742, %v736
    %v1001 = vpack.c.b16 %v743, %v737
    %v1002 = vpack.c.b16 %v744, %v738
    %v1003 = vpack.c.b16 %v751, %v745
    %v1004 = vpack.c.b16 %v752, %v746
    %v1005 = vpack.c.b16 %v753, %v747
    %v1006 = vpack.c.b16 %v754, %v748
    %v1007 = vpack.c.b16 %v755, %v749
    %v1008 = vpack.c.b16 %v756, %v750
    %v1009 = vpack.c.b16 %v763, %v757
    %v1010 = vpack.c.b16 %v764, %v758
    %v1011 = vpack.c.b16 %v765, %v759
    %v1012 = vpack.c.b16 %v766, %v760
    %v1013 = vpack.c.b16 %v767, %v761
    %v1014 = vpack.c.b16 %v768, %v762
    %v1015 = vpack.c.b16 %v775, %v769
    %v1016 = vpack.c.b16 %v776, %v770
    %v1017 = vpack.c.b16 %v777, %v771
    %v1018 = vpack.c.b16 %v778, %v772
    %v1019 = vpack.c.b16 %v779, %v773
    %v1020 = vpack.c.b16 %v780, %v774
    %v1021 = vpack.c.b16 %v787, %v781
    %v1022 = vpack.c.b16 %v788, %v782
    %v1023 = vpack.c.b16 %v789, %v783
    %v1024 = vpack.c.b16 %v790, %v784
    %v1025 = vpack.c.b16 %v791, %v785
    %v1026 = vpack.c.b16 %v792, %v786
    %v1027 = vpack.c.b16 %v799, %v793
    %v1028 = vpack.c.b16 %v800, %v794
    %v1029 = vpack.c.b16 %v801, %v795
    %v1030 = vpack.c.b16 %v802, %v796
    %v1031 = vpack.c.b16 %v803, %v797
    %v1032 = vpack.c.b16 %v804, %v798
    %v1033 = vpack.c.b16 %v811, %v805
    %v1034 = vpack.c.b16 %v812, %v806
    %v1035 = vpack.c.b16 %v813, %v807
    %v1036 = vpack.c.b16 %v814, %v808
    %v1037 = vpack.c.b16 %v815, %v809
    %v1038 = vpack.c.b16 %v816, %v810
    %v1039 = vpack.c.b16 %v823, %v817
    %v1040 = vpack.c.b16 %v824, %v818
    %v1041 = vpack.c.b16 %v825, %v819
    %v1042 = vpack.c.b16 %v826, %v820
    %v1043 = vpack.c.b16 %v827, %v821
    %v1044 = vpack.c.b16 %v828, %v822
    %v1045 = vpack.c.b16 %v835, %v829
    %v1046 = vpack.c.b16 %v836, %v830
    %v1047 = vpack.c.b16 %v837, %v831
    %v1048 = vpack.c.b16 %v838, %v832
    %v1049 = vpack.c.b16 %v839, %v833
    %v1050 = vpack.c.b16 %v840, %v834
    %v1051 = vpack.c.b16 %v847, %v841
    %v1052 = vpack.c.b16 %v848, %v842
    %v1053 = vpack.c.b16 %v849, %v843
    %v1054 = vpack.c.b16 %v850, %v844
    %v1055 = vpack.c.b16 %v851, %v845
    %v1056 = vpack.c.b16 %v852, %v846
    %v1057 = vpack.c.b16 %v859, %v853
    %v1058 = vpack.c.b16 %v860, %v854
    %v1059 = vpack.c.b16 %v861, %v855
    %v1060 = vpack.c.b16 %v862, %v856
    %v1061 = vpack.c.b16 %v863, %v857
    %v1062 = vpack.c.b16 %v864, %v858
    %v1063 = vpack.c.b16 %v871, %v865
    %v1064 = vpack.c.b16 %v872, %v866
    %v1065 = vpack.c.b16 %v873, %v867
    %v1066 = vpack.c.b16 %v874, %v868
    %v1067 = vpack.c.b16 %v875, %v869
    %v1068 = vpack.c.b16 %v876, %v870
    %v1357 = vunpack.c.l.b16 %v205
    %v1358 = vunpack.c.l.b16 %v206
    %v1359 = vunpack.c.l.b16 %v207
    %v1360 = vunpack.c.l.b16 %v208
    %v1361 = vunpack.c.l.b16 %v209
    %v1362 = vunpack.c.l.b16 %v210
    %v1363 = vunpack.c.l.b16 %v211
    %v1364 = vunpack.c.l.b16 %v212
    %v1365 = vunpack.c.l.b16 %v213
    %v1366 = vunpack.c.l.b16 %v214
    %v1367 = vunpack.c.l.b16 %v215
    %v1368 = vunpack.c.l.b16 %v216
    %v1369 = vunpack.c.l.b16 %v217
    %v1370 = vunpack.c.l.b16 %v218
    %v1371 = vunpack.c.l.b16 %v219
    %v1372 = vunpack.c.l.b16 %v220
    %v1373 = vunpack.c.l.b16 %v221
    %v1374 = vunpack.c.l.b16 %v222
    %v1375 = vunpack.c.l.b16 %v223
    %v1376 = vunpack.c.l.b16 %v224
    %v1377 = vunpack.c.l.b16 %v225
    %v1378 = vunpack.c.l.b16 %v226
    %v1379 = vunpack.c.l.b16 %v227
    %v1380 = vunpack.c.l.b16 %v228
    %v1381 = vunpack.c.l.b16 %v229
    %v1382 = vunpack.c.l.b16 %v230
    %v1383 = vunpack.c.l.b16 %v231
    %v1384 = vunpack.c.l.b16 %v232
    %v1385 = vunpack.c.l.b16 %v233
    %v1386 = vunpack.c.l.b16 %v234
    %v1387 = vunpack.c.l.b16 %v235
    %v1388 = vunpack.c.l.b16 %v236
    %v1389 = vunpack.c.l.b16 %v237
    %v1390 = vunpack.c.l.b16 %v238
    %v1391 = vunpack.c.l.b16 %v239
    %v1392 = vunpack.c.l.b16 %v240
    %v1393 = vunpack.c.l.b16 %v241
    %v1394 = vunpack.c.l.b16 %v242
    %v1395 = vunpack.c.l.b16 %v243
    %v1396 = vunpack.c.l.b16 %v244
    %v1397 = vunpack.c.l.b16 %v245
    %v1398 = vunpack.c.l.b16 %v246
    %v1399 = vunpack.c.l.b16 %v247
    %v1400 = vunpack.c.l.b16 %v248
    %v1401 = vunpack.c.l.b16 %v249
    %v1402 = vunpack.c.l.b16 %v250
    %v1403 = vunpack.c.l.b16 %v251
    %v1404 = vunpack.c.l.b16 %v252
    %v1405 = vunpack.c.l.b16 %v253
    %v1406 = vunpack.c.l.b16 %v254
    %v1407 = vunpack.c.l.b16 %v255
    %v1408 = vunpack.c.l.b16 %v256
    %v1409 = vunpack.c.l.b16 %v257
    %v1410 = vunpack.c.l.b16 %v258
    %v1411 = vunpack.c.l.b16 %v259
    %v1412 = vunpack.c.l.b16 %v260
    %v1413 = vunpack.c.l.b16 %v261
    %v1414 = vunpack.c.l.b16 %v262
    %v1415 = vunpack.c.l.b16 %v263
    %v1416 = vunpack.c.l.b16 %v264
    %v1417 = vunpack.c.l.b16 %v265
    %v1418 = vunpack.c.l.b16 %v266
    %v1419 = vunpack.c.l.b16 %v267
    %v1420 = vunpack.c.l.b16 %v268
    %v1421 = vunpack.c.l.b16 %v269
    %v1422 = vunpack.c.l.b16 %v270
    %v1423 = vunpack.c.l.b16 %v271
    %v1424 = vunpack.c.l.b16 %v272
    %v1425 = vunpack.c.l.b16 %v273
    %v1426 = vunpack.c.l.b16 %v274
    %v1427 = vunpack.c.l.b16 %v275
    %v1428 = vunpack.c.l.b16 %v276
    %v1429 = vunpack.c.l.b16 %v277
    %v1430 = vunpack.c.l.b16 %v278
    %v1431 = vunpack.c.l.b16 %v279
    %v1432 = vunpack.c.l.b16 %v280
    %v1433 = vunpack.c.l.b16 %v281
    %v1434 = vunpack.c.l.b16 %v282
    %v1435 = vunpack.c.l.b16 %v283
    %v1436 = vunpack.c.l.b16 %v284
    %v1437 = vunpack.c.l.b16 %v285
    %v1438 = vunpack.c.l.b16 %v286
    %v1439 = vunpack.c.l.b16 %v287
    %v1440 = vunpack.c.l.b16 %v288
    %v1441 = vunpack.c.l.b16 %v289
    %v1442 = vunpack.c.l.b16 %v290
    %v1443 = vunpack.c.l.b16 %v291
    %v1444 = vunpack.c.l.b16 %v292
    %v1445 = vunpack.c.l.b16 %v293
    %v1446 = vunpack.c.l.b16 %v294
    %v1447 = vunpack.c.l.b16 %v295
    %v1448 = vunpack.c.l.b16 %v296
    %v1449 = vunpack.c.l.b16 %v297
    %v1450 = vunpack.c.l.b16 %v298
    %v1451 = vunpack.c.l.b16 %v299
    %v1452 = vunpack.c.l.b16 %v300
    %v1453 = vpack.c.b16 %v1358, %v1357
    %v1454 = vpack.c.b16 %v1360, %v1359
    %v1455 = vpack.c.b16 %v1362, %v1361
    %v1456 = vpack.c.b16 %v1364, %v1363
    %v1457 = vpack.c.b16 %v1366, %v1365
    %v1458 = vpack.c.b16 %v1368, %v1367
    %v1459 = vpack.c.b16 %v1370, %v1369
    %v1460 = vpack.c.b16 %v1372, %v1371
    %v1461 = vpack.c.b16 %v1374, %v1373
    %v1462 = vpack.c.b16 %v1376, %v1375
    %v1463 = vpack.c.b16 %v1378, %v1377
    %v1464 = vpack.c.b16 %v1380, %v1379
    %v1465 = vpack.c.b16 %v1382, %v1381
    %v1466 = vpack.c.b16 %v1384, %v1383
    %v1467 = vpack.c.b16 %v1386, %v1385
    %v1468 = vpack.c.b16 %v1388, %v1387
    %v1469 = vpack.c.b16 %v1390, %v1389
    %v1470 = vpack.c.b16 %v1392, %v1391
    %v1471 = vpack.c.b16 %v1394, %v1393
    %v1472 = vpack.c.b16 %v1396, %v1395
    %v1473 = vpack.c.b16 %v1398, %v1397
    %v1474 = vpack.c.b16 %v1400, %v1399
    %v1475 = vpack.c.b16 %v1402, %v1401
    %v1476 = vpack.c.b16 %v1404, %v1403
    %v1477 = vpack.c.b16 %v1406, %v1405
    %v1478 = vpack.c.b16 %v1408, %v1407
    %v1479 = vpack.c.b16 %v1410, %v1409
    %v1480 = vpack.c.b16 %v1412, %v1411
    %v1481 = vpack.c.b16 %v1414, %v1413
    %v1482 = vpack.c.b16 %v1416, %v1415
    %v1483 = vpack.c.b16 %v1418, %v1417
    %v1484 = vpack.c.b16 %v1420, %v1419
    %v1485 = vpack.c.b16 %v1422, %v1421
    %v1486 = vpack.c.b16 %v1424, %v1423
    %v1487 = vpack.c.b16 %v1426, %v1425
    %v1488 = vpack.c.b16 %v1428, %v1427
    %v1489 = vpack.c.b16 %v1430, %v1429
    %v1490 = vpack.c.b16 %v1432, %v1431
    %v1491 = vpack.c.b16 %v1434, %v1433
    %v1492 = vpack.c.b16 %v1436, %v1435
    %v1493 = vpack.c.b16 %v1438, %v1437
    %v1494 = vpack.c.b16 %v1440, %v1439
    %v1495 = vpack.c.b16 %v1442, %v1441
    %v1496 = vpack.c.b16 %v1444, %v1443
    %v1497 = vpack.c.b16 %v1446, %v1445
    %v1498 = vpack.c.b16 %v1448, %v1447
    %v1499 = vpack.c.b16 %v1450, %v1449
    %v1500 = vpack.c.b16 %v1452, %v1451
    %1549 = vmatprep.subr.bf16.mxu0 0
    %1550 = vmatpush1.bf16.msra.mxu0 %v1453
    %1551 = vmatprep.subr.bf16.mxu0 0
    %1552 = vmatpush1.bf16.msra.mxu0 %v1454
    %1553 = vmatprep.subr.bf16.mxu0 0
    %1554 = vmatpush1.bf16.msra.mxu0 %v1455
    %1555 = vmatprep.subr.bf16.mxu0 0
    %1556 = vmatpush1.bf16.msra.mxu0 %v1456
    %1557 = vmatprep.subr.bf16.mxu0 0
    %1558 = vmatpush1.bf16.msra.mxu0 %v1457
    %1559 = vmatprep.subr.bf16.mxu0 0
    %1560 = vmatpush1.bf16.msra.mxu0 %v1458
    %1561 = vmatprep.subr.bf16.mxu0 0
    %1562 = vmatpush1.bf16.msra.mxu0 %v1459
    %1563 = vmatprep.subr.bf16.mxu0 0
    %1564 = vmatpush1.bf16.msra.mxu0 %v1460
    %1565 = vmatprep.subr.bf16.mxu0 0
    %1566 = vmatpush1.bf16.msra.mxu0 %v1461
    %1567 = vmatprep.subr.bf16.mxu0 0
    %1568 = vmatpush1.bf16.msra.mxu0 %v1462
    %1569 = vmatprep.subr.bf16.mxu0 0
    %1570 = vmatpush1.bf16.msra.mxu0 %v1463
    %1571 = vmatprep.subr.bf16.mxu0 0
    %1572 = vmatpush1.bf16.msra.mxu0 %v1464
    %1573 = vmatprep.subr.bf16.mxu0 0
    %1574 = vmatpush1.bf16.msra.mxu0 %v1465
    %1575 = vmatprep.subr.bf16.mxu0 0
    %1576 = vmatpush1.bf16.msra.mxu0 %v1466
    %1577 = vmatprep.subr.bf16.mxu0 0
    %1578 = vmatpush1.bf16.msra.mxu0 %v1467
    %1579 = vmatprep.subr.bf16.mxu0 0
    %1580 = vmatpush1.bf16.msra.mxu0 %v1468
    %1581 = vmatprep.mubr.bf16.mxu0 %v878
    %1582 = vmatmul.mubr.bf16.gmra.mrb[0].mxu0 %v877
    %v1583 = vpop.f32.mrb[0].mxu0
    %v1584 = vadd.f32 0.0, %v1583
    %v1585 = vpop.f32.mrb[0].mxu0
    %v1586 = vpop.f32.mrb[0].mxu0
    %v1587 = vadd.f32 0.0, %v1586
    %v1588 = vpop.f32.mrb[0].mxu0
    %1589 = vmatprep.mubr.bf16.mxu0 %v884
    %1590 = vmatmul.mubr.bf16.gmra.mrb[0].mxu0 %v883
    %v1591 = vpop.f32.mrb[0].mxu0
    %v1592 = vadd.f32 0.0, %v1591
    %v1593 = vpop.f32.mrb[0].mxu0
    %v1594 = vpop.f32.mrb[0].mxu0
    %v1595 = vadd.f32 0.0, %v1594
    %v1596 = vpop.f32.mrb[0].mxu0
    %1597 = vmatprep.mubr.bf16.mxu0 %v890
    %1598 = vmatmul.mubr.bf16.gmra.mrb[0].mxu0 %v889
    %v1599 = vpop.f32.mrb[0].mxu0
    %v1600 = vadd.f32 0.0, %v1599
    %v1601 = vpop.f32.mrb[0].mxu0
    %v1602 = vpop.f32.mrb[0].mxu0
    %v1603 = vadd.f32 0.0, %v1602
    %v1604 = vpop.f32.mrb[0].mxu0
    %1605 = vmatprep.mubr.bf16.mxu0 %v896
    %1606 = vmatmul.mubr.bf16.gmra.mrb[0].mxu0 %v895
    %v1607 = vpop.f32.mrb[0].mxu0
    %v1608 = vadd.f32 0.0, %v1607
    %v1609 = vpop.f32.mrb[0].mxu0
    %v1610 = vpop.f32.mrb[0].mxu0
    %v1611 = vadd.f32 0.0, %v1610
    %v1612 = vpop.f32.mrb[0].mxu0
    %1613 = vmatprep.mubr.bf16.mxu0 %v902
    %1614 = vmatmul.mubr.bf16.gmra.mrb[0].mxu0 %v901
    %v1615 = vpop.f32.mrb[0].mxu0
    %v1616 = vadd.f32 0.0, %v1615
    %v1617 = vpop.f32.mrb[0].mxu0
    %v1618 = vpop.f32.mrb[0].mxu0
    %v1619 = vadd.f32 0.0, %v1618
    %v1620 = vpop.f32.mrb[0].mxu0
    %1621 = vmatprep.mubr.bf16.mxu0 %v908
    %1622 = vmatmul.mubr.bf16.gmra.mrb[0].mxu0 %v907
    %v1623 = vpop.f32.mrb[0].mxu0
    %v1624 = vadd.f32 0.0, %v1623
    %v1625 = vpop.f32.mrb[0].mxu0
    %v1626 = vpop.f32.mrb[0].mxu0
    %v1627 = vadd.f32 0.0, %v1626
    %v1628 = vpop.f32.mrb[0].mxu0
    %1629 = vmatprep.mubr.bf16.mxu0 %v914
    %1630 = vmatmul.mubr.bf16.gmra.mrb[0].mxu0 %v913
    %v1631 = vpop.f32.mrb[0].mxu0
    %v1632 = vadd.f32 0.0, %v1631
    %v1633 = vpop.f32.mrb[0].mxu0
    %v1634 = vpop.f32.mrb[0].mxu0
    %v1635 = vadd.f32 0.0, %v1634
    %v1636 = vpop.f32.mrb[0].mxu0
    %1637 = vmatprep.mubr.bf16.mxu0 %v920
    %1638 = vmatmul.mubr.bf16.gmra.mrb[0].mxu0 %v919
    %v1639 = vpop.f32.mrb[0].mxu0
    %v1640 = vadd.f32 0.0, %v1639
    %v1641 = vpop.f32.mrb[0].mxu0
    %v1642 = vpop.f32.mrb[0].mxu0
    %v1643 = vadd.f32 0.0, %v1642
    %v1644 = vpop.f32.mrb[0].mxu0
    %1645 = vmatprep.mubr.bf16.mxu0 %v926
    %1646 = vmatmul.mubr.bf16.gmra.mrb[0].mxu0 %v925
    %v1647 = vpop.f32.mrb[0].mxu0
    %v1648 = vadd.f32 0.0, %v1647
    %v1649 = vpop.f32.mrb[0].mxu0
    %v1650 = vpop.f32.mrb[0].mxu0
    %v1651 = vadd.f32 0.0, %v1650
    %v1652 = vpop.f32.mrb[0].mxu0
    %1653 = vmatprep.mubr.bf16.mxu0 %v932
    %1654 = vmatmul.mubr.bf16.gmra.mrb[0].mxu0 %v931
    %v1655 = vpop.f32.mrb[0].mxu0
    %v1656 = vadd.f32 0.0, %v1655
    %v1657 = vpop.f32.mrb[0].mxu0
    %v1658 = vpop.f32.mrb[0].mxu0
    %v1659 = vadd.f32 0.0, %v1658
    %v1660 = vpop.f32.mrb[0].mxu0
    %1661 = vmatprep.mubr.bf16.mxu0 %v938
    %1662 = vmatmul.mubr.bf16.gmra.mrb[0].mxu0 %v937
    %v1663 = vpop.f32.mrb[0].mxu0
    %v1664 = vadd.f32 0.0, %v1663
    %v1665 = vpop.f32.mrb[0].mxu0
    %v1666 = vpop.f32.mrb[0].mxu0
    %v1667 = vadd.f32 0.0, %v1666
    %v1668 = vpop.f32.mrb[0].mxu0
    %1669 = vmatprep.mubr.bf16.mxu0 %v944
    %1670 = vmatmul.mubr.bf16.gmra.mrb[0].mxu0 %v943
    %v1671 = vpop.f32.mrb[0].mxu0
    %v1672 = vadd.f32 0.0, %v1671
    %v1673 = vpop.f32.mrb[0].mxu0
    %v1674 = vpop.f32.mrb[0].mxu0
    %v1675 = vadd.f32 0.0, %v1674
    %v1676 = vpop.f32.mrb[0].mxu0
    %1677 = vmatprep.mubr.bf16.mxu0 %v950
    %1678 = vmatmul.mubr.bf16.gmra.mrb[0].mxu0 %v949
    %v1679 = vpop.f32.mrb[0].mxu0
    %v1680 = vadd.f32 0.0, %v1679
    %v1681 = vpop.f32.mrb[0].mxu0
    %v1682 = vpop.f32.mrb[0].mxu0
    %v1683 = vadd.f32 0.0, %v1682
    %v1684 = vpop.f32.mrb[0].mxu0
    %1685 = vmatprep.mubr.bf16.mxu0 %v956
    %1686 = vmatmul.mubr.bf16.gmra.mrb[0].mxu0 %v955
    %v1687 = vpop.f32.mrb[0].mxu0
    %v1688 = vadd.f32 0.0, %v1687
    %v1689 = vpop.f32.mrb[0].mxu0
    %v1690 = vpop.f32.mrb[0].mxu0
    %v1691 = vadd.f32 0.0, %v1690
    %v1692 = vpop.f32.mrb[0].mxu0
    %1693 = vmatprep.mubr.bf16.mxu0 %v962
    %1694 = vmatmul.mubr.bf16.gmra.mrb[0].mxu0 %v961
    %v1695 = vpop.f32.mrb[0].mxu0
    %v1696 = vadd.f32 0.0, %v1695
    %v1697 = vpop.f32.mrb[0].mxu0
    %v1698 = vpop.f32.mrb[0].mxu0
    %v1699 = vadd.f32 0.0, %v1698
    %v1700 = vpop.f32.mrb[0].mxu0
    %1701 = vmatprep.mubr.bf16.mxu0 %v968
    %1702 = vmatmul.mubr.bf16.gmra.mrb[0].mxu0 %v967
    %v1703 = vpop.f32.mrb[0].mxu0
    %v1704 = vadd.f32 0.0, %v1703
    %v1705 = vpop.f32.mrb[0].mxu0
    %v1706 = vpop.f32.mrb[0].mxu0
    %v1707 = vadd.f32 0.0, %v1706
    %v1708 = vpop.f32.mrb[0].mxu0
    %1709 = vmatprep.mubr.bf16.mxu0 %v974
    %1710 = vmatmul.mubr.bf16.gmra.mrb[0].mxu0 %v973
    %v1711 = vpop.f32.mrb[0].mxu0
    %v1712 = vadd.f32 0.0, %v1711
    %v1713 = vpop.f32.mrb[0].mxu0
    %v1714 = vpop.f32.mrb[0].mxu0
    %v1715 = vadd.f32 0.0, %v1714
    %v1716 = vpop.f32.mrb[0].mxu0
    %1717 = vmatprep.mubr.bf16.mxu0 %v980
    %1718 = vmatmul.mubr.bf16.gmra.mrb[0].mxu0 %v979
    %v1719 = vpop.f32.mrb[0].mxu0
    %v1720 = vadd.f32 0.0, %v1719
    %v1721 = vpop.f32.mrb[0].mxu0
    %v1722 = vpop.f32.mrb[0].mxu0
    %v1723 = vadd.f32 0.0, %v1722
    %v1724 = vpop.f32.mrb[0].mxu0
    %1725 = vmatprep.mubr.bf16.mxu0 %v986
    %1726 = vmatmul.mubr.bf16.gmra.mrb[0].mxu0 %v985
    %v1727 = vpop.f32.mrb[0].mxu0
    %v1728 = vadd.f32 0.0, %v1727
    %v1729 = vpop.f32.mrb[0].mxu0
    %v1730 = vpop.f32.mrb[0].mxu0
    %v1731 = vadd.f32 0.0, %v1730
    %v1732 = vpop.f32.mrb[0].mxu0
    %1733 = vmatprep.mubr.bf16.mxu0 %v992
    %1734 = vmatmul.mubr.bf16.gmra.mrb[0].mxu0 %v991
    %v1735 = vpop.f32.mrb[0].mxu0
    %v1736 = vadd.f32 0.0, %v1735
    %v1737 = vpop.f32.mrb[0].mxu0
    %v1738 = vpop.f32.mrb[0].mxu0
    %v1739 = vadd.f32 0.0, %v1738
    %v1740 = vpop.f32.mrb[0].mxu0
    %1741 = vmatprep.mubr.bf16.mxu0 %v998
    %1742 = vmatmul.mubr.bf16.gmra.mrb[0].mxu0 %v997
    %v1743 = vpop.f32.mrb[0].mxu0
    %v1744 = vadd.f32 0.0, %v1743
    %v1745 = vpop.f32.mrb[0].mxu0
    %v1746 = vpop.f32.mrb[0].mxu0
    %v1747 = vadd.f32 0.0, %v1746
    %v1748 = vpop.f32.mrb[0].mxu0
    %1749 = vmatprep.mubr.bf16.mxu0 %v1004
    %1750 = vmatmul.mubr.bf16.gmra.mrb[0].mxu0 %v1003
    %v1751 = vpop.f32.mrb[0].mxu0
    %v1752 = vadd.f32 0.0, %v1751
    %v1753 = vpop.f32.mrb[0].mxu0
    %v1754 = vpop.f32.mrb[0].mxu0
    %v1755 = vadd.f32 0.0, %v1754
    %v1756 = vpop.f32.mrb[0].mxu0
    %1757 = vmatprep.mubr.bf16.mxu0 %v1010
    %1758 = vmatmul.mubr.bf16.gmra.mrb[0].mxu0 %v1009
    %v1759 = vpop.f32.mrb[0].mxu0
    %v1760 = vadd.f32 0.0, %v1759
    %v1761 = vpop.f32.mrb[0].mxu0
    %v1762 = vpop.f32.mrb[0].mxu0
    %v1763 = vadd.f32 0.0, %v1762
    %v1764 = vpop.f32.mrb[0].mxu0
    %1765 = vmatprep.mubr.bf16.mxu0 %v1016
    %1766 = vmatmul.mubr.bf16.gmra.mrb[0].mxu0 %v1015
    %v1767 = vpop.f32.mrb[0].mxu0
    %v1768 = vadd.f32 0.0, %v1767
    %v1769 = vpop.f32.mrb[0].mxu0
    %v1770 = vpop.f32.mrb[0].mxu0
    %v1771 = vadd.f32 0.0, %v1770
    %v1772 = vpop.f32.mrb[0].mxu0
    %1773 = vmatprep.mubr.bf16.mxu0 %v1022
    %1774 = vmatmul.mubr.bf16.gmra.mrb[0].mxu0 %v1021
    %v1775 = vpop.f32.mrb[0].mxu0
    %v1776 = vadd.f32 0.0, %v1775
    %v1777 = vpop.f32.mrb[0].mxu0
    %v1778 = vpop.f32.mrb[0].mxu0
    %v1779 = vadd.f32 0.0, %v1778
    %v1780 = vpop.f32.mrb[0].mxu0
    %1781 = vmatprep.mubr.bf16.mxu0 %v1028
    %1782 = vmatmul.mubr.bf16.gmra.mrb[0].mxu0 %v1027
    %v1783 = vpop.f32.mrb[0].mxu0
    %v1784 = vadd.f32 0.0, %v1783
    %v1785 = vpop.f32.mrb[0].mxu0
    %v1786 = vpop.f32.mrb[0].mxu0
    %v1787 = vadd.f32 0.0, %v1786
    %v1788 = vpop.f32.mrb[0].mxu0
    %1789 = vmatprep.mubr.bf16.mxu0 %v1034
    %1790 = vmatmul.mubr.bf16.gmra.mrb[0].mxu0 %v1033
    %v1791 = vpop.f32.mrb[0].mxu0
    %v1792 = vadd.f32 0.0, %v1791
    %v1793 = vpop.f32.mrb[0].mxu0
    %v1794 = vpop.f32.mrb[0].mxu0
    %v1795 = vadd.f32 0.0, %v1794
    %v1796 = vpop.f32.mrb[0].mxu0
    %1797 = vmatprep.mubr.bf16.mxu0 %v1040
    %1798 = vmatmul.mubr.bf16.gmra.mrb[0].mxu0 %v1039
    %v1799 = vpop.f32.mrb[0].mxu0
    %v1800 = vadd.f32 0.0, %v1799
    %v1801 = vpop.f32.mrb[0].mxu0
    %v1802 = vpop.f32.mrb[0].mxu0
    %v1803 = vadd.f32 0.0, %v1802
    %v1804 = vpop.f32.mrb[0].mxu0
    %1805 = vmatprep.mubr.bf16.mxu0 %v1046
    %1806 = vmatmul.mubr.bf16.gmra.mrb[0].mxu0 %v1045
    %v1807 = vpop.f32.mrb[0].mxu0
    %v1808 = vadd.f32 0.0, %v1807
    %v1809 = vpop.f32.mrb[0].mxu0
    %v1810 = vpop.f32.mrb[0].mxu0
    %v1811 = vadd.f32 0.0, %v1810
    %v1812 = vpop.f32.mrb[0].mxu0
    %1813 = vmatprep.mubr.bf16.mxu0 %v1052
    %1814 = vmatmul.mubr.bf16.gmra.mrb[0].mxu0 %v1051
    %v1815 = vpop.f32.mrb[0].mxu0
    %v1816 = vadd.f32 0.0, %v1815
    %v1817 = vpop.f32.mrb[0].mxu0
    %v1818 = vpop.f32.mrb[0].mxu0
    %v1819 = vadd.f32 0.0, %v1818
    %v1820 = vpop.f32.mrb[0].mxu0
    %1821 = vmatprep.mubr.bf16.mxu0 %v1058
    %1822 = vmatmul.mubr.bf16.gmra.mrb[0].mxu0 %v1057
    %v1823 = vpop.f32.mrb[0].mxu0
    %v1824 = vadd.f32 0.0, %v1823
    %v1825 = vpop.f32.mrb[0].mxu0
    %v1826 = vpop.f32.mrb[0].mxu0
    %v1827 = vadd.f32 0.0, %v1826
    %v1828 = vpop.f32.mrb[0].mxu0
    %1829 = vmatprep.mubr.bf16.mxu0 %v1064
    %1830 = vmatmul.mubr.bf16.gmra.mrb[0].mxu0 %v1063
    %v1831 = vpop.f32.mrb[0].mxu0
    %v1832 = vadd.f32 0.0, %v1831
    %v1833 = vpop.f32.mrb[0].mxu0
    %v1834 = vpop.f32.mrb[0].mxu0
    %v1835 = vadd.f32 0.0, %v1834
    %v1836 = vpop.f32.mrb[0].mxu0
    %1837 = vdwg.mxu0
    %1838 = vmatprep.subr.bf16.mxu0 0
    %1839 = vmatpush1.bf16.msra.mxu0 %v1469
    %1840 = vmatprep.subr.bf16.mxu0 0
    %1841 = vmatpush1.bf16.msra.mxu0 %v1470
    %1842 = vmatprep.subr.bf16.mxu0 0
    %1843 = vmatpush1.bf16.msra.mxu0 %v1471
    %1844 = vmatprep.subr.bf16.mxu0 0
    %1845 = vmatpush1.bf16.msra.mxu0 %v1472
    %1846 = vmatprep.subr.bf16.mxu0 0
    %1847 = vmatpush1.bf16.msra.mxu0 %v1473
    %1848 = vmatprep.subr.bf16.mxu0 0
    %1849 = vmatpush1.bf16.msra.mxu0 %v1474
    %1850 = vmatprep.subr.bf16.mxu0 0
    %1851 = vmatpush1.bf16.msra.mxu0 %v1475
    %1852 = vmatprep.subr.bf16.mxu0 0
    %1853 = vmatpush1.bf16.msra.mxu0 %v1476
    %1854 = vmatprep.subr.bf16.mxu0 0
    %1855 = vmatpush1.bf16.msra.mxu0 %v1477
    %1856 = vmatprep.subr.bf16.mxu0 0
    %1857 = vmatpush1.bf16.msra.mxu0 %v1478
    %1858 = vmatprep.subr.bf16.mxu0 0
    %1859 = vmatpush1.bf16.msra.mxu0 %v1479
    %1860 = vmatprep.subr.bf16.mxu0 0
    %1861 = vmatpush1.bf16.msra.mxu0 %v1480
    %1862 = vmatprep.subr.bf16.mxu0 0
    %1863 = vmatpush1.bf16.msra.mxu0 %v1481
    %1864 = vmatprep.subr.bf16.mxu0 0
    %1865 = vmatpush1.bf16.msra.mxu0 %v1482
    %1866 = vmatprep.subr.bf16.mxu0 0
    %1867 = vmatpush1.bf16.msra.mxu0 %v1483
    %1868 = vmatprep.subr.bf16.mxu0 0
    %1869 = vmatpush1.bf16.msra.mxu0 %v1484
    %1870 = vmatprep.mubr.bf16.mxu0 %v880
    %1871 = vmatmul.mubr.bf16.gmra.mrb[0].mxu0 %v879
    %v1872 = vpop.f32.mrb[0].mxu0
    %v1873 = vadd.f32 %v1584, %v1872
    %v1874 = vpop.f32.mrb[0].mxu0
    %v1875 = vpop.f32.mrb[0].mxu0
    %v1876 = vadd.f32 %v1587, %v1875
    %v1877 = vpop.f32.mrb[0].mxu0
    %1878 = vmatprep.mubr.bf16.mxu0 %v886
    %1879 = vmatmul.mubr.bf16.gmra.mrb[0].mxu0 %v885
    %v1880 = vpop.f32.mrb[0].mxu0
    %v1881 = vadd.f32 %v1592, %v1880
    %v1882 = vpop.f32.mrb[0].mxu0
    %v1883 = vpop.f32.mrb[0].mxu0
    %v1884 = vadd.f32 %v1595, %v1883
    %v1885 = vpop.f32.mrb[0].mxu0
    %1886 = vmatprep.mubr.bf16.mxu0 %v892
    %1887 = vmatmul.mubr.bf16.gmra.mrb[0].mxu0 %v891
    %v1888 = vpop.f32.mrb[0].mxu0
    %v1889 = vadd.f32 %v1600, %v1888
    %v1890 = vpop.f32.mrb[0].mxu0
    %v1891 = vpop.f32.mrb[0].mxu0
    %v1892 = vadd.f32 %v1603, %v1891
    %v1893 = vpop.f32.mrb[0].mxu0
    %1894 = vmatprep.mubr.bf16.mxu0 %v898
    %1895 = vmatmul.mubr.bf16.gmra.mrb[0].mxu0 %v897
    %v1896 = vpop.f32.mrb[0].mxu0
    %v1897 = vadd.f32 %v1608, %v1896
    %v1898 = vpop.f32.mrb[0].mxu0
    %v1899 = vpop.f32.mrb[0].mxu0
    %v1900 = vadd.f32 %v1611, %v1899
    %v1901 = vpop.f32.mrb[0].mxu0
    %1902 = vmatprep.mubr.bf16.mxu0 %v904
    %1903 = vmatmul.mubr.bf16.gmra.mrb[0].mxu0 %v903
    %v1904 = vpop.f32.mrb[0].mxu0
    %v1905 = vadd.f32 %v1616, %v1904
    %v1906 = vpop.f32.mrb[0].mxu0
    %v1907 = vpop.f32.mrb[0].mxu0
    %v1908 = vadd.f32 %v1619, %v1907
    %v1909 = vpop.f32.mrb[0].mxu0
    %1910 = vmatprep.mubr.bf16.mxu0 %v910
    %1911 = vmatmul.mubr.bf16.gmra.mrb[0].mxu0 %v909
    %v1912 = vpop.f32.mrb[0].mxu0
    %v1913 = vadd.f32 %v1624, %v1912
    %v1914 = vpop.f32.mrb[0].mxu0
    %v1915 = vpop.f32.mrb[0].mxu0
    %v1916 = vadd.f32 %v1627, %v1915
    %v1917 = vpop.f32.mrb[0].mxu0
    %1918 = vmatprep.mubr.bf16.mxu0 %v916
    %1919 = vmatmul.mubr.bf16.gmra.mrb[0].mxu0 %v915
    %v1920 = vpop.f32.mrb[0].mxu0
    %v1921 = vadd.f32 %v1632, %v1920
    %v1922 = vpop.f32.mrb[0].mxu0
    %v1923 = vpop.f32.mrb[0].mxu0
    %v1924 = vadd.f32 %v1635, %v1923
    %v1925 = vpop.f32.mrb[0].mxu0
    %1926 = vmatprep.mubr.bf16.mxu0 %v922
    %1927 = vmatmul.mubr.bf16.gmra.mrb[0].mxu0 %v921
    %v1928 = vpop.f32.mrb[0].mxu0
    %v1929 = vadd.f32 %v1640, %v1928
    %v1930 = vpop.f32.mrb[0].mxu0
    %v1931 = vpop.f32.mrb[0].mxu0
    %v1932 = vadd.f32 %v1643, %v1931
    %v1933 = vpop.f32.mrb[0].mxu0
    %1934 = vmatprep.mubr.bf16.mxu0 %v928
    %1935 = vmatmul.mubr.bf16.gmra.mrb[0].mxu0 %v927
    %v1936 = vpop.f32.mrb[0].mxu0
    %v1937 = vadd.f32 %v1648, %v1936
    %v1938 = vpop.f32.mrb[0].mxu0
    %v1939 = vpop.f32.mrb[0].mxu0
    %v1940 = vadd.f32 %v1651, %v1939
    %v1941 = vpop.f32.mrb[0].mxu0
    %1942 = vmatprep.mubr.bf16.mxu0 %v934
    %1943 = vmatmul.mubr.bf16.gmra.mrb[0].mxu0 %v933
    %v1944 = vpop.f32.mrb[0].mxu0
    %v1945 = vadd.f32 %v1656, %v1944
    %v1946 = vpop.f32.mrb[0].mxu0
    %v1947 = vpop.f32.mrb[0].mxu0
    %v1948 = vadd.f32 %v1659, %v1947
    %v1949 = vpop.f32.mrb[0].mxu0
    %1950 = vmatprep.mubr.bf16.mxu0 %v940
    %1951 = vmatmul.mubr.bf16.gmra.mrb[0].mxu0 %v939
    %v1952 = vpop.f32.mrb[0].mxu0
    %v1953 = vadd.f32 %v1664, %v1952
    %v1954 = vpop.f32.mrb[0].mxu0
    %v1955 = vpop.f32.mrb[0].mxu0
    %v1956 = vadd.f32 %v1667, %v1955
    %v1957 = vpop.f32.mrb[0].mxu0
    %1958 = vmatprep.mubr.bf16.mxu0 %v946
    %1959 = vmatmul.mubr.bf16.gmra.mrb[0].mxu0 %v945
    %v1960 = vpop.f32.mrb[0].mxu0
    %v1961 = vadd.f32 %v1672, %v1960
    %v1962 = vpop.f32.mrb[0].mxu0
    %v1963 = vpop.f32.mrb[0].mxu0
    %v1964 = vadd.f32 %v1675, %v1963
    %v1965 = vpop.f32.mrb[0].mxu0
    %1966 = vmatprep.mubr.bf16.mxu0 %v952
    %1967 = vmatmul.mubr.bf16.gmra.mrb[0].mxu0 %v951
    %v1968 = vpop.f32.mrb[0].mxu0
    %v1969 = vadd.f32 %v1680, %v1968
    %v1970 = vpop.f32.mrb[0].mxu0
    %v1971 = vpop.f32.mrb[0].mxu0
    %v1972 = vadd.f32 %v1683, %v1971
    %v1973 = vpop.f32.mrb[0].mxu0
    %1974 = vmatprep.mubr.bf16.mxu0 %v958
    %1975 = vmatmul.mubr.bf16.gmra.mrb[0].mxu0 %v957
    %v1976 = vpop.f32.mrb[0].mxu0
    %v1977 = vadd.f32 %v1688, %v1976
    %v1978 = vpop.f32.mrb[0].mxu0
    %v1979 = vpop.f32.mrb[0].mxu0
    %v1980 = vadd.f32 %v1691, %v1979
    %v1981 = vpop.f32.mrb[0].mxu0
    %1982 = vmatprep.mubr.bf16.mxu0 %v964
    %1983 = vmatmul.mubr.bf16.gmra.mrb[0].mxu0 %v963
    %v1984 = vpop.f32.mrb[0].mxu0
    %v1985 = vadd.f32 %v1696, %v1984
    %v1986 = vpop.f32.mrb[0].mxu0
    %v1987 = vpop.f32.mrb[0].mxu0
    %v1988 = vadd.f32 %v1699, %v1987
    %v1989 = vpop.f32.mrb[0].mxu0
    %1990 = vmatprep.mubr.bf16.mxu0 %v970
    %1991 = vmatmul.mubr.bf16.gmra.mrb[0].mxu0 %v969
    %v1992 = vpop.f32.mrb[0].mxu0
    %v1993 = vadd.f32 %v1704, %v1992
    %v1994 = vpop.f32.mrb[0].mxu0
    %v1995 = vpop.f32.mrb[0].mxu0
    %v1996 = vadd.f32 %v1707, %v1995
    %v1997 = vpop.f32.mrb[0].mxu0
    %1998 = vmatprep.mubr.bf16.mxu0 %v976
    %1999 = vmatmul.mubr.bf16.gmra.mrb[0].mxu0 %v975
    %v2000 = vpop.f32.mrb[0].mxu0
    %v2001 = vadd.f32 %v1712, %v2000
    %v2002 = vpop.f32.mrb[0].mxu0
    %v2003 = vpop.f32.mrb[0].mxu0
    %v2004 = vadd.f32 %v1715, %v2003
    %v2005 = vpop.f32.mrb[0].mxu0
    %2006 = vmatprep.mubr.bf16.mxu0 %v982
    %2007 = vmatmul.mubr.bf16.gmra.mrb[0].mxu0 %v981
    %v2008 = vpop.f32.mrb[0].mxu0
    %v2009 = vadd.f32 %v1720, %v2008
    %v2010 = vpop.f32.mrb[0].mxu0
    %v2011 = vpop.f32.mrb[0].mxu0
    %v2012 = vadd.f32 %v1723, %v2011
    %v2013 = vpop.f32.mrb[0].mxu0
    %2014 = vmatprep.mubr.bf16.mxu0 %v988
    %2015 = vmatmul.mubr.bf16.gmra.mrb[0].mxu0 %v987
    %v2016 = vpop.f32.mrb[0].mxu0
    %v2017 = vadd.f32 %v1728, %v2016
    %v2018 = vpop.f32.mrb[0].mxu0
    %v2019 = vpop.f32.mrb[0].mxu0
    %v2020 = vadd.f32 %v1731, %v2019
    %v2021 = vpop.f32.mrb[0].mxu0
    %2022 = vmatprep.mubr.bf16.mxu0 %v994
    %2023 = vmatmul.mubr.bf16.gmra.mrb[0].mxu0 %v993
    %v2024 = vpop.f32.mrb[0].mxu0
    %v2025 = vadd.f32 %v1736, %v2024
    %v2026 = vpop.f32.mrb[0].mxu0
    %v2027 = vpop.f32.mrb[0].mxu0
    %v2028 = vadd.f32 %v1739, %v2027
    %v2029 = vpop.f32.mrb[0].mxu0
    %2030 = vmatprep.mubr.bf16.mxu0 %v1000
    %2031 = vmatmul.mubr.bf16.gmra.mrb[0].mxu0 %v999
    %v2032 = vpop.f32.mrb[0].mxu0
    %v2033 = vadd.f32 %v1744, %v2032
    %v2034 = vpop.f32.mrb[0].mxu0
    %v2035 = vpop.f32.mrb[0].mxu0
    %v2036 = vadd.f32 %v1747, %v2035
    %v2037 = vpop.f32.mrb[0].mxu0
    %2038 = vmatprep.mubr.bf16.mxu0 %v1006
    %2039 = vmatmul.mubr.bf16.gmra.mrb[0].mxu0 %v1005
    %v2040 = vpop.f32.mrb[0].mxu0
    %v2041 = vadd.f32 %v1752, %v2040
    %v2042 = vpop.f32.mrb[0].mxu0
    %v2043 = vpop.f32.mrb[0].mxu0
    %v2044 = vadd.f32 %v1755, %v2043
    %v2045 = vpop.f32.mrb[0].mxu0
    %2046 = vmatprep.mubr.bf16.mxu0 %v1012
    %2047 = vmatmul.mubr.bf16.gmra.mrb[0].mxu0 %v1011
    %v2048 = vpop.f32.mrb[0].mxu0
    %v2049 = vadd.f32 %v1760, %v2048
    %v2050 = vpop.f32.mrb[0].mxu0
    %v2051 = vpop.f32.mrb[0].mxu0
    %v2052 = vadd.f32 %v1763, %v2051
    %v2053 = vpop.f32.mrb[0].mxu0
    %2054 = vmatprep.mubr.bf16.mxu0 %v1018
    %2055 = vmatmul.mubr.bf16.gmra.mrb[0].mxu0 %v1017
    %v2056 = vpop.f32.mrb[0].mxu0
    %v2057 = vadd.f32 %v1768, %v2056
    %v2058 = vpop.f32.mrb[0].mxu0
    %v2059 = vpop.f32.mrb[0].mxu0
    %v2060 = vadd.f32 %v1771, %v2059
    %v2061 = vpop.f32.mrb[0].mxu0
    %2062 = vmatprep.mubr.bf16.mxu0 %v1024
    %2063 = vmatmul.mubr.bf16.gmra.mrb[0].mxu0 %v1023
    %v2064 = vpop.f32.mrb[0].mxu0
    %v2065 = vadd.f32 %v1776, %v2064
    %v2066 = vpop.f32.mrb[0].mxu0
    %v2067 = vpop.f32.mrb[0].mxu0
    %v2068 = vadd.f32 %v1779, %v2067
    %v2069 = vpop.f32.mrb[0].mxu0
    %2070 = vmatprep.mubr.bf16.mxu0 %v1030
    %2071 = vmatmul.mubr.bf16.gmra.mrb[0].mxu0 %v1029
    %v2072 = vpop.f32.mrb[0].mxu0
    %v2073 = vadd.f32 %v1784, %v2072
    %v2074 = vpop.f32.mrb[0].mxu0
    %v2075 = vpop.f32.mrb[0].mxu0
    %v2076 = vadd.f32 %v1787, %v2075
    %v2077 = vpop.f32.mrb[0].mxu0
    %2078 = vmatprep.mubr.bf16.mxu0 %v1036
    %2079 = vmatmul.mubr.bf16.gmra.mrb[0].mxu0 %v1035
    %v2080 = vpop.f32.mrb[0].mxu0
    %v2081 = vadd.f32 %v1792, %v2080
    %v2082 = vpop.f32.mrb[0].mxu0
    %v2083 = vpop.f32.mrb[0].mxu0
    %v2084 = vadd.f32 %v1795, %v2083
    %v2085 = vpop.f32.mrb[0].mxu0
    %2086 = vmatprep.mubr.bf16.mxu0 %v1042
    %2087 = vmatmul.mubr.bf16.gmra.mrb[0].mxu0 %v1041
    %v2088 = vpop.f32.mrb[0].mxu0
    %v2089 = vadd.f32 %v1800, %v2088
    %v2090 = vpop.f32.mrb[0].mxu0
    %v2091 = vpop.f32.mrb[0].mxu0
    %v2092 = vadd.f32 %v1803, %v2091
    %v2093 = vpop.f32.mrb[0].mxu0
    %2094 = vmatprep.mubr.bf16.mxu0 %v1048
    %2095 = vmatmul.mubr.bf16.gmra.mrb[0].mxu0 %v1047
    %v2096 = vpop.f32.mrb[0].mxu0
    %v2097 = vadd.f32 %v1808, %v2096
    %v2098 = vpop.f32.mrb[0].mxu0
    %v2099 = vpop.f32.mrb[0].mxu0
    %v2100 = vadd.f32 %v1811, %v2099
    %v2101 = vpop.f32.mrb[0].mxu0
    %2102 = vmatprep.mubr.bf16.mxu0 %v1054
    %2103 = vmatmul.mubr.bf16.gmra.mrb[0].mxu0 %v1053
    %v2104 = vpop.f32.mrb[0].mxu0
    %v2105 = vadd.f32 %v1816, %v2104
    %v2106 = vpop.f32.mrb[0].mxu0
    %v2107 = vpop.f32.mrb[0].mxu0
    %v2108 = vadd.f32 %v1819, %v2107
    %v2109 = vpop.f32.mrb[0].mxu0
    %2110 = vmatprep.mubr.bf16.mxu0 %v1060
    %2111 = vmatmul.mubr.bf16.gmra.mrb[0].mxu0 %v1059
    %v2112 = vpop.f32.mrb[0].mxu0
    %v2113 = vadd.f32 %v1824, %v2112
    %v2114 = vpop.f32.mrb[0].mxu0
    %v2115 = vpop.f32.mrb[0].mxu0
    %v2116 = vadd.f32 %v1827, %v2115
    %v2117 = vpop.f32.mrb[0].mxu0
    %2118 = vmatprep.mubr.bf16.mxu0 %v1066
    %2119 = vmatmul.mubr.bf16.gmra.mrb[0].mxu0 %v1065
    %v2120 = vpop.f32.mrb[0].mxu0
    %v2121 = vadd.f32 %v1832, %v2120
    %v2122 = vpop.f32.mrb[0].mxu0
    %v2123 = vpop.f32.mrb[0].mxu0
    %v2124 = vadd.f32 %v1835, %v2123
    %v2125 = vpop.f32.mrb[0].mxu0
    %2126 = vdwg.mxu0
    %2127 = vmatprep.subr.bf16.mxu0 0
    %2128 = vmatpush1.bf16.msra.mxu0 %v1485
    %2129 = vmatprep.subr.bf16.mxu0 0
    %2130 = vmatpush1.bf16.msra.mxu0 %v1486
    %2131 = vmatprep.subr.bf16.mxu0 0
    %2132 = vmatpush1.bf16.msra.mxu0 %v1487
    %2133 = vmatprep.subr.bf16.mxu0 0
    %2134 = vmatpush1.bf16.msra.mxu0 %v1488
    %2135 = vmatprep.subr.bf16.mxu0 0
    %2136 = vmatpush1.bf16.msra.mxu0 %v1489
    %2137 = vmatprep.subr.bf16.mxu0 0
    %2138 = vmatpush1.bf16.msra.mxu0 %v1490
    %2139 = vmatprep.subr.bf16.mxu0 0
    %2140 = vmatpush1.bf16.msra.mxu0 %v1491
    %2141 = vmatprep.subr.bf16.mxu0 0
    %2142 = vmatpush1.bf16.msra.mxu0 %v1492
    %2143 = vmatprep.subr.bf16.mxu0 0
    %2144 = vmatpush1.bf16.msra.mxu0 %v1493
    %2145 = vmatprep.subr.bf16.mxu0 0
    %2146 = vmatpush1.bf16.msra.mxu0 %v1494
    %2147 = vmatprep.subr.bf16.mxu0 0
    %2148 = vmatpush1.bf16.msra.mxu0 %v1495
    %2149 = vmatprep.subr.bf16.mxu0 0
    %2150 = vmatpush1.bf16.msra.mxu0 %v1496
    %2151 = vmatprep.subr.bf16.mxu0 0
    %2152 = vmatpush1.bf16.msra.mxu0 %v1497
    %2153 = vmatprep.subr.bf16.mxu0 0
    %2154 = vmatpush1.bf16.msra.mxu0 %v1498
    %2155 = vmatprep.subr.bf16.mxu0 0
    %2156 = vmatpush1.bf16.msra.mxu0 %v1499
    %2157 = vmatprep.subr.bf16.mxu0 0
    %2158 = vmatpush1.bf16.msra.mxu0 %v1500
    %2159 = vmatprep.mubr.bf16.mxu0 %v882
    %2160 = vmatmul.mubr.bf16.gmra.mrb[0].mxu0 %v881
    %v2161 = vpop.f32.mrb[0].mxu0
    %v2162 = vadd.f32 %v1873, %v2161
    %v2163 = vpop.f32.mrb[0].mxu0
    %v2164 = vpop.f32.mrb[0].mxu0
    %v2165 = vadd.f32 %v1876, %v2164
    %v2166 = vpop.f32.mrb[0].mxu0
    %2167 = vmatprep.mubr.bf16.mxu0 %v888
    %2168 = vmatmul.mubr.bf16.gmra.mrb[0].mxu0 %v887
    %v2169 = vpop.f32.mrb[0].mxu0
    %v2170 = vadd.f32 %v1881, %v2169
    %v2171 = vpop.f32.mrb[0].mxu0
    %v2172 = vpop.f32.mrb[0].mxu0
    %v2173 = vadd.f32 %v1884, %v2172
    %v2174 = vpop.f32.mrb[0].mxu0
    %2175 = vmatprep.mubr.bf16.mxu0 %v894
    %2176 = vmatmul.mubr.bf16.gmra.mrb[0].mxu0 %v893
    %v2177 = vpop.f32.mrb[0].mxu0
    %v2178 = vadd.f32 %v1889, %v2177
    %v2179 = vpop.f32.mrb[0].mxu0
    %v2180 = vpop.f32.mrb[0].mxu0
    %v2181 = vadd.f32 %v1892, %v2180
    %v2182 = vpop.f32.mrb[0].mxu0
    %2183 = vmatprep.mubr.bf16.mxu0 %v900
    %2184 = vmatmul.mubr.bf16.gmra.mrb[0].mxu0 %v899
    %v2185 = vpop.f32.mrb[0].mxu0
    %v2186 = vadd.f32 %v1897, %v2185
    %v2187 = vpop.f32.mrb[0].mxu0
    %v2188 = vpop.f32.mrb[0].mxu0
    %v2189 = vadd.f32 %v1900, %v2188
    %v2190 = vpop.f32.mrb[0].mxu0
    %2191 = vmatprep.mubr.bf16.mxu0 %v906
    %2192 = vmatmul.mubr.bf16.gmra.mrb[0].mxu0 %v905
    %v2193 = vpop.f32.mrb[0].mxu0
    %v2194 = vadd.f32 %v1905, %v2193
    %v2195 = vpop.f32.mrb[0].mxu0
    %v2196 = vpop.f32.mrb[0].mxu0
    %v2197 = vadd.f32 %v1908, %v2196
    %v2198 = vpop.f32.mrb[0].mxu0
    %2199 = vmatprep.mubr.bf16.mxu0 %v912
    %2200 = vmatmul.mubr.bf16.gmra.mrb[0].mxu0 %v911
    %v2201 = vpop.f32.mrb[0].mxu0
    %v2202 = vadd.f32 %v1913, %v2201
    %v2203 = vpop.f32.mrb[0].mxu0
    %v2204 = vpop.f32.mrb[0].mxu0
    %v2205 = vadd.f32 %v1916, %v2204
    %v2206 = vpop.f32.mrb[0].mxu0
    %2207 = vmatprep.mubr.bf16.mxu0 %v918
    %2208 = vmatmul.mubr.bf16.gmra.mrb[0].mxu0 %v917
    %v2209 = vpop.f32.mrb[0].mxu0
    %v2210 = vadd.f32 %v1921, %v2209
    %v2211 = vpop.f32.mrb[0].mxu0
    %v2212 = vpop.f32.mrb[0].mxu0
    %v2213 = vadd.f32 %v1924, %v2212
    %v2214 = vpop.f32.mrb[0].mxu0
    %2215 = vmatprep.mubr.bf16.mxu0 %v924
    %2216 = vmatmul.mubr.bf16.gmra.mrb[0].mxu0 %v923
    %v2217 = vpop.f32.mrb[0].mxu0
    %v2218 = vadd.f32 %v1929, %v2217
    %v2219 = vpop.f32.mrb[0].mxu0
    %v2220 = vpop.f32.mrb[0].mxu0
    %v2221 = vadd.f32 %v1932, %v2220
    %v2222 = vpop.f32.mrb[0].mxu0
    %2223 = vmatprep.mubr.bf16.mxu0 %v930
    %2224 = vmatmul.mubr.bf16.gmra.mrb[0].mxu0 %v929
    %v2225 = vpop.f32.mrb[0].mxu0
    %v2226 = vadd.f32 %v1937, %v2225
    %v2227 = vpop.f32.mrb[0].mxu0
    %v2228 = vpop.f32.mrb[0].mxu0
    %v2229 = vadd.f32 %v1940, %v2228
    %v2230 = vpop.f32.mrb[0].mxu0
    %2231 = vmatprep.mubr.bf16.mxu0 %v936
    %2232 = vmatmul.mubr.bf16.gmra.mrb[0].mxu0 %v935
    %v2233 = vpop.f32.mrb[0].mxu0
    %v2234 = vadd.f32 %v1945, %v2233
    %v2235 = vpop.f32.mrb[0].mxu0
    %v2236 = vpop.f32.mrb[0].mxu0
    %v2237 = vadd.f32 %v1948, %v2236
    %v2238 = vpop.f32.mrb[0].mxu0
    %2239 = vmatprep.mubr.bf16.mxu0 %v942
    %2240 = vmatmul.mubr.bf16.gmra.mrb[0].mxu0 %v941
    %v2241 = vpop.f32.mrb[0].mxu0
    %v2242 = vadd.f32 %v1953, %v2241
    %v2243 = vpop.f32.mrb[0].mxu0
    %v2244 = vpop.f32.mrb[0].mxu0
    %v2245 = vadd.f32 %v1956, %v2244
    %v2246 = vpop.f32.mrb[0].mxu0
    %2247 = vmatprep.mubr.bf16.mxu0 %v948
    %2248 = vmatmul.mubr.bf16.gmra.mrb[0].mxu0 %v947
    %v2249 = vpop.f32.mrb[0].mxu0
    %v2250 = vadd.f32 %v1961, %v2249
    %v2251 = vpop.f32.mrb[0].mxu0
    %v2252 = vpop.f32.mrb[0].mxu0
    %v2253 = vadd.f32 %v1964, %v2252
    %v2254 = vpop.f32.mrb[0].mxu0
    %2255 = vmatprep.mubr.bf16.mxu0 %v954
    %2256 = vmatmul.mubr.bf16.gmra.mrb[0].mxu0 %v953
    %v2257 = vpop.f32.mrb[0].mxu0
    %v2258 = vadd.f32 %v1969, %v2257
    %v2259 = vpop.f32.mrb[0].mxu0
    %v2260 = vpop.f32.mrb[0].mxu0
    %v2261 = vadd.f32 %v1972, %v2260
    %v2262 = vpop.f32.mrb[0].mxu0
    %2263 = vmatprep.mubr.bf16.mxu0 %v960
    %2264 = vmatmul.mubr.bf16.gmra.mrb[0].mxu0 %v959
    %v2265 = vpop.f32.mrb[0].mxu0
    %v2266 = vadd.f32 %v1977, %v2265
    %v2267 = vpop.f32.mrb[0].mxu0
    %v2268 = vpop.f32.mrb[0].mxu0
    %v2269 = vadd.f32 %v1980, %v2268
    %v2270 = vpop.f32.mrb[0].mxu0
    %2271 = vmatprep.mubr.bf16.mxu0 %v966
    %2272 = vmatmul.mubr.bf16.gmra.mrb[0].mxu0 %v965
    %v2273 = vpop.f32.mrb[0].mxu0
    %v2274 = vadd.f32 %v1985, %v2273
    %v2275 = vpop.f32.mrb[0].mxu0
    %v2276 = vpop.f32.mrb[0].mxu0
    %v2277 = vadd.f32 %v1988, %v2276
    %v2278 = vpop.f32.mrb[0].mxu0
    %2279 = vmatprep.mubr.bf16.mxu0 %v972
    %2280 = vmatmul.mubr.bf16.gmra.mrb[0].mxu0 %v971
    %v2281 = vpop.f32.mrb[0].mxu0
    %v2282 = vadd.f32 %v1993, %v2281
    %v2283 = vpop.f32.mrb[0].mxu0
    %v2284 = vpop.f32.mrb[0].mxu0
    %v2285 = vadd.f32 %v1996, %v2284
    %v2286 = vpop.f32.mrb[0].mxu0
    %2287 = vmatprep.mubr.bf16.mxu0 %v978
    %2288 = vmatmul.mubr.bf16.gmra.mrb[0].mxu0 %v977
    %v2289 = vpop.f32.mrb[0].mxu0
    %v2290 = vadd.f32 %v2001, %v2289
    %v2291 = vpop.f32.mrb[0].mxu0
    %v2292 = vpop.f32.mrb[0].mxu0
    %v2293 = vadd.f32 %v2004, %v2292
    %v2294 = vpop.f32.mrb[0].mxu0
    %2295 = vmatprep.mubr.bf16.mxu0 %v984
    %2296 = vmatmul.mubr.bf16.gmra.mrb[0].mxu0 %v983
    %v2297 = vpop.f32.mrb[0].mxu0
    %v2298 = vadd.f32 %v2009, %v2297
    %v2299 = vpop.f32.mrb[0].mxu0
    %v2300 = vpop.f32.mrb[0].mxu0
    %v2301 = vadd.f32 %v2012, %v2300
    %v2302 = vpop.f32.mrb[0].mxu0
    %2303 = vmatprep.mubr.bf16.mxu0 %v990
    %2304 = vmatmul.mubr.bf16.gmra.mrb[0].mxu0 %v989
    %v2305 = vpop.f32.mrb[0].mxu0
    %v2306 = vadd.f32 %v2017, %v2305
    %v2307 = vpop.f32.mrb[0].mxu0
    %v2308 = vpop.f32.mrb[0].mxu0
    %v2309 = vadd.f32 %v2020, %v2308
    %v2310 = vpop.f32.mrb[0].mxu0
    %2311 = vmatprep.mubr.bf16.mxu0 %v996
    %2312 = vmatmul.mubr.bf16.gmra.mrb[0].mxu0 %v995
    %v2313 = vpop.f32.mrb[0].mxu0
    %v2314 = vadd.f32 %v2025, %v2313
    %v2315 = vpop.f32.mrb[0].mxu0
    %v2316 = vpop.f32.mrb[0].mxu0
    %v2317 = vadd.f32 %v2028, %v2316
    %v2318 = vpop.f32.mrb[0].mxu0
    %2319 = vmatprep.mubr.bf16.mxu0 %v1002
    %2320 = vmatmul.mubr.bf16.gmra.mrb[0].mxu0 %v1001
    %v2321 = vpop.f32.mrb[0].mxu0
    %v2322 = vadd.f32 %v2033, %v2321
    %v2323 = vpop.f32.mrb[0].mxu0
    %v2324 = vpop.f32.mrb[0].mxu0
    %v2325 = vadd.f32 %v2036, %v2324
    %v2326 = vpop.f32.mrb[0].mxu0
    %2327 = vmatprep.mubr.bf16.mxu0 %v1008
    %2328 = vmatmul.mubr.bf16.gmra.mrb[0].mxu0 %v1007
    %v2329 = vpop.f32.mrb[0].mxu0
    %v2330 = vadd.f32 %v2041, %v2329
    %v2331 = vpop.f32.mrb[0].mxu0
    %v2332 = vpop.f32.mrb[0].mxu0
    %v2333 = vadd.f32 %v2044, %v2332
    %v2334 = vpop.f32.mrb[0].mxu0
    %2335 = vmatprep.mubr.bf16.mxu0 %v1014
    %2336 = vmatmul.mubr.bf16.gmra.mrb[0].mxu0 %v1013
    %v2337 = vpop.f32.mrb[0].mxu0
    %v2338 = vadd.f32 %v2049, %v2337
    %v2339 = vpop.f32.mrb[0].mxu0
    %v2340 = vpop.f32.mrb[0].mxu0
    %v2341 = vadd.f32 %v2052, %v2340
    %v2342 = vpop.f32.mrb[0].mxu0
    %2343 = vmatprep.mubr.bf16.mxu0 %v1020
    %2344 = vmatmul.mubr.bf16.gmra.mrb[0].mxu0 %v1019
    %v2345 = vpop.f32.mrb[0].mxu0
    %v2346 = vadd.f32 %v2057, %v2345
    %v2347 = vpop.f32.mrb[0].mxu0
    %v2348 = vpop.f32.mrb[0].mxu0
    %v2349 = vadd.f32 %v2060, %v2348
    %v2350 = vpop.f32.mrb[0].mxu0
    %2351 = vmatprep.mubr.bf16.mxu0 %v1026
    %2352 = vmatmul.mubr.bf16.gmra.mrb[0].mxu0 %v1025
    %v2353 = vpop.f32.mrb[0].mxu0
    %v2354 = vadd.f32 %v2065, %v2353
    %v2355 = vpop.f32.mrb[0].mxu0
    %v2356 = vpop.f32.mrb[0].mxu0
    %v2357 = vadd.f32 %v2068, %v2356
    %v2358 = vpop.f32.mrb[0].mxu0
    %2359 = vmatprep.mubr.bf16.mxu0 %v1032
    %2360 = vmatmul.mubr.bf16.gmra.mrb[0].mxu0 %v1031
    %v2361 = vpop.f32.mrb[0].mxu0
    %v2362 = vadd.f32 %v2073, %v2361
    %v2363 = vpop.f32.mrb[0].mxu0
    %v2364 = vpop.f32.mrb[0].mxu0
    %v2365 = vadd.f32 %v2076, %v2364
    %v2366 = vpop.f32.mrb[0].mxu0
    %2367 = vmatprep.mubr.bf16.mxu0 %v1038
    %2368 = vmatmul.mubr.bf16.gmra.mrb[0].mxu0 %v1037
    %v2369 = vpop.f32.mrb[0].mxu0
    %v2370 = vadd.f32 %v2081, %v2369
    %v2371 = vpop.f32.mrb[0].mxu0
    %v2372 = vpop.f32.mrb[0].mxu0
    %v2373 = vadd.f32 %v2084, %v2372
    %v2374 = vpop.f32.mrb[0].mxu0
    %2375 = vmatprep.mubr.bf16.mxu0 %v1044
    %2376 = vmatmul.mubr.bf16.gmra.mrb[0].mxu0 %v1043
    %v2377 = vpop.f32.mrb[0].mxu0
    %v2378 = vadd.f32 %v2089, %v2377
    %v2379 = vpop.f32.mrb[0].mxu0
    %v2380 = vpop.f32.mrb[0].mxu0
    %v2381 = vadd.f32 %v2092, %v2380
    %v2382 = vpop.f32.mrb[0].mxu0
    %2383 = vmatprep.mubr.bf16.mxu0 %v1050
    %2384 = vmatmul.mubr.bf16.gmra.mrb[0].mxu0 %v1049
    %v2385 = vpop.f32.mrb[0].mxu0
    %v2386 = vadd.f32 %v2097, %v2385
    %v2387 = vpop.f32.mrb[0].mxu0
    %v2388 = vpop.f32.mrb[0].mxu0
    %v2389 = vadd.f32 %v2100, %v2388
    %v2390 = vpop.f32.mrb[0].mxu0
    %2391 = vmatprep.mubr.bf16.mxu0 %v1056
    %2392 = vmatmul.mubr.bf16.gmra.mrb[0].mxu0 %v1055
    %v2393 = vpop.f32.mrb[0].mxu0
    %v2394 = vadd.f32 %v2105, %v2393
    %v2395 = vpop.f32.mrb[0].mxu0
    %v2396 = vpop.f32.mrb[0].mxu0
    %v2397 = vadd.f32 %v2108, %v2396
    %v2398 = vpop.f32.mrb[0].mxu0
    %2399 = vmatprep.mubr.bf16.mxu0 %v1062
    %2400 = vmatmul.mubr.bf16.gmra.mrb[0].mxu0 %v1061
    %v2401 = vpop.f32.mrb[0].mxu0
    %v2402 = vadd.f32 %v2113, %v2401
    %v2403 = vpop.f32.mrb[0].mxu0
    %v2404 = vpop.f32.mrb[0].mxu0
    %v2405 = vadd.f32 %v2116, %v2404
    %v2406 = vpop.f32.mrb[0].mxu0
    %2407 = vmatprep.mubr.bf16.mxu0 %v1068
    %2408 = vmatmul.mubr.bf16.gmra.mrb[0].mxu0 %v1067
    %v2409 = vpop.f32.mrb[0].mxu0
    %v2410 = vadd.f32 %v2121, %v2409
    %v2411 = vpop.f32.mrb[0].mxu0
    %v2412 = vpop.f32.mrb[0].mxu0
    %v2413 = vadd.f32 %v2124, %v2412
    %v2414 = vpop.f32.mrb[0].mxu0
    %2415 = vdwg.mxu0
    %v2416 = vpack.c.bf16 %v2165, %v2162
    %v2417 = vpack.c.bf16 %v2173, %v2170
    %v2418 = vpack.c.bf16 %v2181, %v2178
    %v2419 = vpack.c.bf16 %v2189, %v2186
    %v2420 = vpack.c.bf16 %v2197, %v2194
    %v2421 = vpack.c.bf16 %v2205, %v2202
    %v2422 = vpack.c.bf16 %v2213, %v2210
    %v2423 = vpack.c.bf16 %v2221, %v2218
    %v2424 = vpack.c.bf16 %v2229, %v2226
    %v2425 = vpack.c.bf16 %v2237, %v2234
    %v2426 = vpack.c.bf16 %v2245, %v2242
    %v2427 = vpack.c.bf16 %v2253, %v2250
    %v2428 = vpack.c.bf16 %v2261, %v2258
    %v2429 = vpack.c.bf16 %v2269, %v2266
    %v2430 = vpack.c.bf16 %v2277, %v2274
    %v2431 = vpack.c.bf16 %v2285, %v2282
    %v2432 = vpack.c.bf16 %v2293, %v2290
    %v2433 = vpack.c.bf16 %v2301, %v2298
    %v2434 = vpack.c.bf16 %v2309, %v2306
    %v2435 = vpack.c.bf16 %v2317, %v2314
    %v2436 = vpack.c.bf16 %v2325, %v2322
    %v2437 = vpack.c.bf16 %v2333, %v2330
    %v2438 = vpack.c.bf16 %v2341, %v2338
    %v2439 = vpack.c.bf16 %v2349, %v2346
    %v2440 = vpack.c.bf16 %v2357, %v2354
    %v2441 = vpack.c.bf16 %v2365, %v2362
    %v2442 = vpack.c.bf16 %v2373, %v2370
    %v2443 = vpack.c.bf16 %v2381, %v2378
    %v2444 = vpack.c.bf16 %v2389, %v2386
    %v2445 = vpack.c.bf16 %v2397, %v2394
    %v2446 = vpack.c.bf16 %v2405, %v2402
    %v2447 = vpack.c.bf16 %v2413, %v2410
    %v2480 = vunpack.c.l.b16 %v2416
    %v2481 = vunpack.c.h.b16 %v2416
    %v2482 = vunpack.c.l.b16 %v2417
    %v2483 = vunpack.c.h.b16 %v2417
    %v2484 = vunpack.c.l.b16 %v2418
    %v2485 = vunpack.c.h.b16 %v2418
    %v2486 = vunpack.c.l.b16 %v2419
    %v2487 = vunpack.c.h.b16 %v2419
    %v2488 = vunpack.c.l.b16 %v2420
    %v2489 = vunpack.c.h.b16 %v2420
    %v2490 = vunpack.c.l.b16 %v2421
    %v2491 = vunpack.c.h.b16 %v2421
    %v2492 = vunpack.c.l.b16 %v2422
    %v2493 = vunpack.c.h.b16 %v2422
    %v2494 = vunpack.c.l.b16 %v2423
    %v2495 = vunpack.c.h.b16 %v2423
    %v2496 = vunpack.c.l.b16 %v2424
    %v2497 = vunpack.c.h.b16 %v2424
    %v2498 = vunpack.c.l.b16 %v2425
    %v2499 = vunpack.c.h.b16 %v2425
    %v2500 = vunpack.c.l.b16 %v2426
    %v2501 = vunpack.c.h.b16 %v2426
    %v2502 = vunpack.c.l.b16 %v2427
    %v2503 = vunpack.c.h.b16 %v2427
    %v2504 = vunpack.c.l.b16 %v2428
    %v2505 = vunpack.c.h.b16 %v2428
    %v2506 = vunpack.c.l.b16 %v2429
    %v2507 = vunpack.c.h.b16 %v2429
    %v2508 = vunpack.c.l.b16 %v2430
    %v2509 = vunpack.c.h.b16 %v2430
    %v2510 = vunpack.c.l.b16 %v2431
    %v2511 = vunpack.c.h.b16 %v2431
    %v2512 = vunpack.c.l.b16 %v2432
    %v2513 = vunpack.c.h.b16 %v2432
    %v2514 = vunpack.c.l.b16 %v2433
    %v2515 = vunpack.c.h.b16 %v2433
    %v2516 = vunpack.c.l.b16 %v2434
    %v2517 = vunpack.c.h.b16 %v2434
    %v2518 = vunpack.c.l.b16 %v2435
    %v2519 = vunpack.c.h.b16 %v2435
    %v2520 = vunpack.c.l.b16 %v2436
    %v2521 = vunpack.c.h.b16 %v2436
    %v2522 = vunpack.c.l.b16 %v2437
    %v2523 = vunpack.c.h.b16 %v2437
    %v2524 = vunpack.c.l.b16 %v2438
    %v2525 = vunpack.c.h.b16 %v2438
    %v2526 = vunpack.c.l.b16 %v2439
    %v2527 = vunpack.c.h.b16 %v2439
    %v2528 = vunpack.c.l.b16 %v2440
    %v2529 = vunpack.c.h.b16 %v2440
    %v2530 = vunpack.c.l.b16 %v2441
    %v2531 = vunpack.c.h.b16 %v2441
    %v2532 = vunpack.c.l.b16 %v2442
    %v2533 = vunpack.c.h.b16 %v2442
    %v2534 = vunpack.c.l.b16 %v2443
    %v2535 = vunpack.c.h.b16 %v2443
    %v2536 = vunpack.c.l.b16 %v2444
    %v2537 = vunpack.c.h.b16 %v2444
    %v2538 = vunpack.c.l.b16 %v2445
    %v2539 = vunpack.c.h.b16 %v2445
    %v2540 = vunpack.c.l.b16 %v2446
    %v2541 = vunpack.c.h.b16 %v2446
    %v2542 = vunpack.c.l.b16 %v2447
    %v2543 = vunpack.c.h.b16 %v2447
    %v2544 = vpack.c.b16 %v2480, %v2480
    %v2545 = vpack.c.b16 %v2481, %v2481
    %v2546 = vpack.c.b16 %v2482, %v2482
    %v2547 = vpack.c.b16 %v2483, %v2483
    %v2548 = vpack.c.b16 %v2484, %v2484
    %v2549 = vpack.c.b16 %v2485, %v2485
    %v2550 = vpack.c.b16 %v2486, %v2486
    %v2551 = vpack.c.b16 %v2487, %v2487
    %v2552 = vpack.c.b16 %v2488, %v2488
    %v2553 = vpack.c.b16 %v2489, %v2489
    %v2554 = vpack.c.b16 %v2490, %v2490
    %v2555 = vpack.c.b16 %v2491, %v2491
    %v2556 = vpack.c.b16 %v2492, %v2492
    %v2557 = vpack.c.b16 %v2493, %v2493
    %v2558 = vpack.c.b16 %v2494, %v2494
    %v2559 = vpack.c.b16 %v2495, %v2495
    %v2560 = vpack.c.b16 %v2496, %v2496
    %v2561 = vpack.c.b16 %v2497, %v2497
    %v2562 = vpack.c.b16 %v2498, %v2498
    %v2563 = vpack.c.b16 %v2499, %v2499
    %v2564 = vpack.c.b16 %v2500, %v2500
    %v2565 = vpack.c.b16 %v2501, %v2501
    %v2566 = vpack.c.b16 %v2502, %v2502
    %v2567 = vpack.c.b16 %v2503, %v2503
    %v2568 = vpack.c.b16 %v2504, %v2504
    %v2569 = vpack.c.b16 %v2505, %v2505
    %v2570 = vpack.c.b16 %v2506, %v2506
    %v2571 = vpack.c.b16 %v2507, %v2507
    %v2572 = vpack.c.b16 %v2508, %v2508
    %v2573 = vpack.c.b16 %v2509, %v2509
    %v2574 = vpack.c.b16 %v2510, %v2510
    %v2575 = vpack.c.b16 %v2511, %v2511
    %v2576 = vpack.c.b16 %v2512, %v2512
    %v2577 = vpack.c.b16 %v2513, %v2513
    %v2578 = vpack.c.b16 %v2514, %v2514
    %v2579 = vpack.c.b16 %v2515, %v2515
    %v2580 = vpack.c.b16 %v2516, %v2516
    %v2581 = vpack.c.b16 %v2517, %v2517
    %v2582 = vpack.c.b16 %v2518, %v2518
    %v2583 = vpack.c.b16 %v2519, %v2519
    %v2584 = vpack.c.b16 %v2520, %v2520
    %v2585 = vpack.c.b16 %v2521, %v2521
    %v2586 = vpack.c.b16 %v2522, %v2522
    %v2587 = vpack.c.b16 %v2523, %v2523
    %v2588 = vpack.c.b16 %v2524, %v2524
    %v2589 = vpack.c.b16 %v2525, %v2525
    %v2590 = vpack.c.b16 %v2526, %v2526
    %v2591 = vpack.c.b16 %v2527, %v2527
    %v2592 = vpack.c.b16 %v2528, %v2528
    %v2593 = vpack.c.b16 %v2529, %v2529
    %v2594 = vpack.c.b16 %v2530, %v2530
    %v2595 = vpack.c.b16 %v2531, %v2531
    %v2596 = vpack.c.b16 %v2532, %v2532
    %v2597 = vpack.c.b16 %v2533, %v2533
    %v2598 = vpack.c.b16 %v2534, %v2534
    %v2599 = vpack.c.b16 %v2535, %v2535
    %v2600 = vpack.c.b16 %v2536, %v2536
    %v2601 = vpack.c.b16 %v2537, %v2537
    %v2602 = vpack.c.b16 %v2538, %v2538
    %v2603 = vpack.c.b16 %v2539, %v2539
    %v2604 = vpack.c.b16 %v2540, %v2540
    %v2605 = vpack.c.b16 %v2541, %v2541
    %v2606 = vpack.c.b16 %v2542, %v2542
    %v2607 = vpack.c.b16 %v2543, %v2543
    %2672 = vst [vmem:[#allocation2] sm:$0xf] %v2544
    %2673 = vst [vmem:[#allocation2 + $0x4] sm:$0xf] %v2545
    %2674 = vst [vmem:[#allocation2 + $0x8] sm:$0xf] %v2546
    %2675 = vst [vmem:[#allocation2 + $0xc] sm:$0xf] %v2547
    %2676 = vst [vmem:[#allocation2 + $0x10] sm:$0xf] %v2548
    %2677 = vst [vmem:[#allocation2 + $0x14] sm:$0xf] %v2549
    %2678 = vst [vmem:[#allocation2 + $0x18] sm:$0xf] %v2550
    %2679 = vst [vmem:[#allocation2 + $0x1c] sm:$0xf] %v2551
    %2680 = vst [vmem:[#allocation2 + $0x20] sm:$0xf] %v2552
    %2681 = vst [vmem:[#allocation2 + $0x24] sm:$0xf] %v2553
    %2682 = vst [vmem:[#allocation2 + $0x28] sm:$0xf] %v2554
    %2683 = vst [vmem:[#allocation2 + $0x2c] sm:$0xf] %v2555
    %2684 = vst [vmem:[#allocation2 + $0x30] sm:$0xf] %v2556
    %2685 = vst [vmem:[#allocation2 + $0x34] sm:$0xf] %v2557
    %2686 = vst [vmem:[#allocation2 + $0x38] sm:$0xf] %v2558
    %2687 = vst [vmem:[#allocation2 + $0x3c] sm:$0xf] %v2559
    %2688 = vst [vmem:[#allocation2 + $0x40] sm:$0xf] %v2560
    %2689 = vst [vmem:[#allocation2 + $0x44] sm:$0xf] %v2561
    %2690 = vst [vmem:[#allocation2 + $0x48] sm:$0xf] %v2562
    %2691 = vst [vmem:[#allocation2 + $0x4c] sm:$0xf] %v2563
    %2692 = vst [vmem:[#allocation2 + $0x50] sm:$0xf] %v2564
    %2693 = vst [vmem:[#allocation2 + $0x54] sm:$0xf] %v2565
    %2694 = vst [vmem:[#allocation2 + $0x58] sm:$0xf] %v2566
    %2695 = vst [vmem:[#allocation2 + $0x5c] sm:$0xf] %v2567
    %2696 = vst [vmem:[#allocation2 + $0x60] sm:$0xf] %v2568
    %2697 = vst [vmem:[#allocation2 + $0x64] sm:$0xf] %v2569
    %2698 = vst [vmem:[#allocation2 + $0x68] sm:$0xf] %v2570
    %2699 = vst [vmem:[#allocation2 + $0x6c] sm:$0xf] %v2571
    %2700 = vst [vmem:[#allocation2 + $0x70] sm:$0xf] %v2572
    %2701 = vst [vmem:[#allocation2 + $0x74] sm:$0xf] %v2573
    %2702 = vst [vmem:[#allocation2 + $0x78] sm:$0xf] %v2574
    %2703 = vst [vmem:[#allocation2 + $0x7c] sm:$0xf] %v2575
    %2704 = vst [vmem:[#allocation2 + $0x80] sm:$0xf] %v2576
    %2705 = vst [vmem:[#allocation2 + $0x84] sm:$0xf] %v2577
    %2706 = vst [vmem:[#allocation2 + $0x88] sm:$0xf] %v2578
    %2707 = vst [vmem:[#allocation2 + $0x8c] sm:$0xf] %v2579
    %2708 = vst [vmem:[#allocation2 + $0x90] sm:$0xf] %v2580
    %2709 = vst [vmem:[#allocation2 + $0x94] sm:$0xf] %v2581
    %2710 = vst [vmem:[#allocation2 + $0x98] sm:$0xf] %v2582
    %2711 = vst [vmem:[#allocation2 + $0x9c] sm:$0xf] %v2583
    %2712 = vst [vmem:[#allocation2 + $0xa0] sm:$0xf] %v2584
    %2713 = vst [vmem:[#allocation2 + $0xa4] sm:$0xf] %v2585
    %2714 = vst [vmem:[#allocation2 + $0xa8] sm:$0xf] %v2586
    %2715 = vst [vmem:[#allocation2 + $0xac] sm:$0xf] %v2587
    %2716 = vst [vmem:[#allocation2 + $0xb0] sm:$0xf] %v2588
    %2717 = vst [vmem:[#allocation2 + $0xb4] sm:$0xf] %v2589
    %2718 = vst [vmem:[#allocation2 + $0xb8] sm:$0xf] %v2590
    %2719 = vst [vmem:[#allocation2 + $0xbc] sm:$0xf] %v2591
    %2720 = vst [vmem:[#allocation2 + $0xc0] sm:$0xf] %v2592
    %2721 = vst [vmem:[#allocation2 + $0xc4] sm:$0xf] %v2593
    %2722 = vst [vmem:[#allocation2 + $0xc8] sm:$0xf] %v2594
    %2723 = vst [vmem:[#allocation2 + $0xcc] sm:$0xf] %v2595
    %2724 = vst [vmem:[#allocation2 + $0xd0] sm:$0xf] %v2596
    %2725 = vst [vmem:[#allocation2 + $0xd4] sm:$0xf] %v2597
    %2726 = vst [vmem:[#allocation2 + $0xd8] sm:$0xf] %v2598
    %2727 = vst [vmem:[#allocation2 + $0xdc] sm:$0xf] %v2599
    %2728 = vst [vmem:[#allocation2 + $0xe0] sm:$0xf] %v2600
    %2729 = vst [vmem:[#allocation2 + $0xe4] sm:$0xf] %v2601
    %2730 = vst [vmem:[#allocation2 + $0xe8] sm:$0xf] %v2602
    %2731 = vst [vmem:[#allocation2 + $0xec] sm:$0xf] %v2603
    %2732 = vst [vmem:[#allocation2 + $0xf0] sm:$0xf] %v2604
    %2733 = vst [vmem:[#allocation2 + $0xf4] sm:$0xf] %v2605
    %2734 = vst [vmem:[#allocation2 + $0xf8] sm:$0xf] %v2606
    %2735 = vst [vmem:[#allocation2 + $0xfc] sm:$0xf] %v2607
    // Predicated region
    $region10: #{patch_embed_forward.1} parent=1 // pred_check
      _
    $region11: #{patch_embed_forward.1} parent=1 // pred_check_branch
      %2737 = sbr.rel (0) target = $region13
    $region12: #{patch_embed_forward.1} parent=1 // pred_region
      %s2739 = ssub.s32 4096, 4096
      %2740 = vsyncadd [#allocation3], %s2739
      %s2741 = sshll.u32 [#allocation2], 4
      %s2742 = int_to_ptr.vmem [resolvable:$true] %s2741
      %2747 = dma.vmem_to_hbm [thread:$0]  %s2742, 4096, %s2, [#allocation3], 64, 64, 4
    $region13: #{patch_embed_forward.1} parent=1 // pred_fallthru
      _
    // Predicated region
    $region14: #{patch_embed_forward.1} parent=1 // pred_check
      _
    $region15: #{patch_embed_forward.1} parent=1 // pred_check_branch
      %2749 = sbr.rel (0) target = $region17
    $region16: #{patch_embed_forward.1} parent=1 // pred_region
      %2750 = dma.done [#allocation3], 4096
    $region17: #{patch_embed_forward.1} parent=1 // pred_fallthru
      _
    %2751 = vsyncpa [#allocation3], 1

</llo_original>
